<compile_context>
chip_gen: v7x
topology: tpu7x:2x2x1
jax: 0.10.0
libtpu: 0.0.40
codegen_flags: <defaults>
</compile_context>

<pallas_src>
import functools

import jax
import jax.numpy as jnp
from jax.experimental import pallas as pl
from jax.experimental.pallas import tpu as pltpu


# ---------------------------------------------------------------------------
# In-kernel building blocks
# ---------------------------------------------------------------------------

def _causal_conv_tile(x, carry_ref, w_ref, b_ref, K, dilation):
    """One dilated causal conv (+ ReLU) on a T-tile with streaming history.

    x        : (tT, c_in)  f32 — this conv's input for the current tile
    carry_ref: (hist, c_in) f32 VMEM scratch — last hist=(K-1)*dilation rows of
               this conv's input stream from the previous tile (zeros at tile 0,
               which reproduces the causal left-pad).
    w_ref    : (K*c_in, c_out) bf16 weight, tap-major stacking
    b_ref    : (1, c_out) f32 bias
    Returns (tT, c_out) f32 = relu(conv(x) + b); updates carry_ref.
    """
    tT, c_in = x.shape
    hist = (K - 1) * dilation
    c_out = b_ref.shape[-1]

    full = jnp.concatenate([carry_ref[...], x], axis=0)        # (hist + tT, c_in)
    # Save the last `hist` rows of the input stream for the next tile.
    carry_ref[...] = full[tT:tT + hist, :]

    if c_in >= 128:
        # Wide channels: K accumulated matmuls — no lane-axis concat relayout,
        # no 3x-activation im2col tile in VMEM.
        acc = jnp.zeros((tT, c_out), jnp.float32)
        for k in range(K):
            off = hist - (K - 1 - k) * dilation
            tap = full[off:off + tT, :].astype(jnp.bfloat16)
            w_k = w_ref[k * c_in:(k + 1) * c_in, :]
            acc = acc + jnp.dot(tap, w_k, preferred_element_type=jnp.float32)
        y = acc + b_ref[...]
    else:
        # Narrow channels: one im2col matmul packs the MXU reduction dim.
        taps = [
            full[hist - (K - 1 - k) * dilation:
                 hist - (K - 1 - k) * dilation + tT, :].astype(jnp.bfloat16)
            for k in range(K)
        ]
        im2col = jnp.concatenate(taps, axis=-1)                # (tT, K*c_in) bf16
        y = jnp.dot(im2col, w_ref[...],
                    preferred_element_type=jnp.float32) + b_ref[...]
    return jnp.maximum(y, 0.0)


def _fused_tcn_kernel(*refs, block_cfg, K):
    """Whole TCN head for one (batch row, T-tile); weights resident in VMEM.

    refs = (x_ref, <weight refs...>, o_ref, <per-conv carry scratches...>)
      x_ref  : (1, tT, C0)
      o_ref  : (1, tT, N_pad)         (lane-dense, padded num_outs)
      carries: two per block, f32, shape ((K-1)*dilation, c)
    """
    n_carry = 2 * len(block_cfg)
    x_ref = refs[0]
    w_refs = refs[1:-(n_carry + 1)]
    o_ref = refs[-(n_carry + 1)]
    carry_refs = refs[-n_carry:]

    tt = pl.program_id(1)

    # Reset the causal carries at the first T-tile of every batch row.  This is
    # per-(b, tile==0), so it stays correct when megacore splits the batch axis.
    @pl.when(tt == 0)
    def _init_carries():
        for cr in carry_refs:
            cr[...] = jnp.zeros(cr.shape, cr.dtype)

    x = x_ref[0].astype(jnp.float32)                           # (tT, C0)

    widx = 0
    cidx = 0
    for dilation, has_down in block_cfg:
        w1, b1 = w_refs[widx], w_refs[widx + 1]
        w2, b2 = w_refs[widx + 2], w_refs[widx + 3]
        widx += 4
        # conv1 -> chomp -> relu ; conv2 -> chomp -> relu   (dropout: identity)
        h = _causal_conv_tile(x, carry_refs[cidx], w1, b1, K, dilation)
        h = _causal_conv_tile(h, carry_refs[cidx + 1], w2, b2, K, dilation)
        cidx += 2
        # residual branch (1x1 conv if channel count changes), fused
        if has_down:
            wd, bd = w_refs[widx], w_refs[widx + 1]
            widx += 2
            res = jnp.dot(x.astype(jnp.bfloat16), wd[...],
                          preferred_element_type=jnp.float32) + bd[...]
        else:
            res = x
        x = jnp.maximum(h + res, 0.0)

    # head projection (lane-dense padded output), fused in the same kernel
    w_out, b_out = w_refs[widx], w_refs[widx + 1]
    y = jnp.dot(x.astype(jnp.bfloat16), w_out[...],
                preferred_element_type=jnp.float32) + b_out[...]
    o_ref[0] = y.astype(o_ref.dtype)


# ---------------------------------------------------------------------------
# Wrapper: single pallas_call for the whole forward
# ---------------------------------------------------------------------------

def _whole(shape):
    """BlockSpec for a weight that is fully resident (same block every step)."""
    nd = len(shape)
    # TODO(synk): on v7x, single-buffer these invariant weights via
    # pipeline_mode=pl.Buffered(1) to halve their VMEM footprint.
    return pl.BlockSpec(shape, lambda b, t, _nd=nd: (0,) * _nd)


def _pick_t_tile(T, target=256):
    """Largest multiple-of-8 divisor of T that is <= target (or T if small)."""
    if T <= target:
        return T
    for cand in range(min(target, T), 7, -8):
        if T % cand == 0:
            return cand
    return T


def _estimate_vmem_bytes(weight_args, t_tile, c0, c_max, K, n_pad):
    w_bytes = sum(int(a.size) * a.dtype.itemsize for a in weight_args)
    act_bytes = t_tile * c_max * 4 * 8                 # a few f32 activation tiles
    im2col_bytes = t_tile * K * c_max * 2              # bf16 im2col operand
    io_bytes = 2 * t_tile * c0 * 4 + 2 * t_tile * n_pad * 4   # double-buffered I/O
    est = 2 * w_bytes + act_bytes + im2col_bytes + io_bytes
    return int(max(32 << 20, min(2 * est, 64 << 20)))


def tcn_head_forward(params, features, t_tile=None):
    """Pallas forward. features: (B, T, input_dim) -> (B, T, num_outs)."""
    B, T, C0 = features.shape
    K = int(params["kernel_size"])
    assert K >= 2, "kernel_size must be >= 2"
    num_outs = params["b_out"].shape[-1]

    if t_tile is None:
        t_tile = _pick_t_tile(T)
    assert T % t_tile == 0, (T, t_tile)
    assert t_tile == T or t_tile % 8 == 0, t_tile
    n_t = T // t_tile

    # Lane-dense head output: pad num_outs up to a multiple of 128 so the final
    # stores are unmasked full-lane vst; slice back below.
    n_pad = ((num_outs + 127) // 128) * 128
    w_out, b_out = params["w_out"], params["b_out"]
    if n_pad != num_outs:
        w_out = jnp.pad(w_out, ((0, 0), (0, n_pad - num_outs)))
        b_out = jnp.pad(b_out, ((0, 0), (0, n_pad - num_outs)))

    args = [features]
    in_specs = [pl.BlockSpec((1, t_tile, C0), lambda b, t: (b, t, 0))]
    block_cfg = []
    scratch = []
    c_max = C0
    c_in = C0
    for i, blk in enumerate(params["blocks"]):
        dilation = 2 ** i
        has_down = blk["wd"] is not None
        block_cfg.append((dilation, has_down))
        c_out = blk["b1"].shape[-1]
        tensors = [blk["w1s"], blk["b1"], blk["w2s"], blk["b2"]]
        if has_down:
            tensors += [blk["wd"], blk["bd"]]
        for t in tensors:
            args.append(t)
            in_specs.append(_whole(t.shape))
        hist = (K - 1) * dilation
        scratch.append(pltpu.VMEM((hist, c_in), jnp.float32))   # conv1 input carry
        scratch.append(pltpu.VMEM((hist, c_out), jnp.float32))  # conv2 input carry
        c_max = max(c_max, c_out)
        c_in = c_out
    for t in (w_out, b_out):
        args.append(t)
        in_specs.append(_whole(t.shape))

    kernel = functools.partial(_fused_tcn_kernel,
                               block_cfg=tuple(block_cfg), K=K)
    vmem_bytes = _estimate_vmem_bytes(args[1:], t_tile, C0, c_max, K, n_pad)

    out = pl.pallas_call(
        kernel,
        out_shape=jax.ShapeDtypeStruct((B, T, n_pad), features.dtype),
        grid=(B, n_t),
        in_specs=in_specs,
        out_specs=pl.BlockSpec((1, t_tile, n_pad), lambda b, t: (b, t, 0)),
        scratch_shapes=scratch,
        compiler_params=pltpu.CompilerParams(
            dimension_semantics=("parallel", "arbitrary"),
            vmem_limit_bytes=vmem_bytes),
    )(*args)

    if n_pad != num_outs:
        out = out[:, :, :num_outs]
    return out


# ---------------------------------------------------------------------------
# Parameter setup (deterministic, synthetic)
# ---------------------------------------------------------------------------

def _weight_norm_effective(v, g):
    """PyTorch weight_norm (dim=0): W = g * v / ||v||, norm over (C_in, K)."""
    norm = jnp.sqrt(jnp.sum(v * v, axis=(1, 2), keepdims=True))
    return g[:, None, None] * v / norm


def init_params(key, input_dim, inner_channels, num_outs, kernel_size):
    def normal(k, shape, std=0.1):
        return std * jax.random.normal(k, shape, jnp.float32)

    blocks = []
    c_in = input_dim
    for c_out in inner_channels:
        key, k1, k2, k3, k4, k5, k6, k7, k8 = jax.random.split(key, 9)
        v1 = normal(k1, (c_out, c_in, kernel_size))   # PyTorch Conv1d (Cout,Cin,K)
        g1 = 1.0 + 0.1 * jax.random.normal(k2, (c_out,), jnp.float32)
        v2 = normal(k4, (c_out, c_out, kernel_size))
        g2 = 1.0 + 0.1 * jax.random.normal(k5, (c_out,), jnp.float32)
        w1 = jnp.transpose(_weight_norm_effective(v1, g1), (2, 1, 0))  # (K,Cin,Cout)
        w2 = jnp.transpose(_weight_norm_effective(v2, g2), (2, 1, 0))
        blk = {
            # tap-major stacked matmul weights, stored bf16 for the MXU
            "w1s": w1.reshape(kernel_size * c_in, c_out).astype(jnp.bfloat16),
            "b1": normal(k3, (c_out,)).reshape(1, -1),
            "w2s": w2.reshape(kernel_size * c_out, c_out).astype(jnp.bfloat16),
            "b2": normal(k6, (c_out,)).reshape(1, -1),
        }
        if c_in != c_out:  # downsample 1x1 conv
            wd = normal(k7, (c_out, c_in, 1))
            blk["wd"] = jnp.transpose(wd[:, :, 0], (1, 0)).astype(jnp.bfloat16)
            blk["bd"] = normal(k8, (c_out,)).reshape(1, -1)
        else:
            blk["wd"] = None
            blk["bd"] = None
        blocks.append(blk)
        c_in = c_out

    key, kw, kb = jax.random.split(key, 3)
    w_out = normal(kw, (num_outs, c_in))  # PyTorch Linear (N, C_last)
    return {
        "blocks": blocks,
        "w_out": jnp.transpose(w_out, (1, 0)).astype(jnp.bfloat16),  # (C_last, N)
        "b_out": normal(kb, (num_outs,)).reshape(1, -1),
        "kernel_size": kernel_size,
    }


# ---------------------------------------------------------------------------
# Pure-JAX reference (f32 math on the same — bf16-stored — weights)
# ---------------------------------------------------------------------------

def _ref_dconv(x, w_stacked, b, K, dilation):
    B, T, c_in = x.shape
    w = w_stacked.astype(jnp.float32).reshape(K, c_in, -1)
    pad = (K - 1) * dilation
    xp = jnp.pad(x, ((0, 0), (pad, 0), (0, 0)))
    acc = 0.0
    for k in range(K):
        acc = acc + jnp.einsum("btc,cd->btd",
                               xp[:, k * dilation:k * dilation + T, :], w[k])
    return acc + b


def ref_forward(params, features):
    K = params["kernel_size"]
    x = features
    for i, blk in enumerate(params["blocks"]):
        d = 2 ** i
        h = jax.nn.relu(_ref_dconv(x, blk["w1s"], blk["b1"], K, d))
        h2 = jax.nn.relu(_ref_dconv(h, blk["w2s"], blk["b2"], K, d))
        if blk["wd"] is None:
            res = x
        else:
            res = x @ blk["wd"].astype(jnp.float32) + blk["bd"]
        x = jax.nn.relu(h2 + res)
    return x @ params["w_out"].astype(jnp.float32) + params["b_out"]


# ---------------------------------------------------------------------------

if __name__ == "__main__":
    B, T = 2, 16
    input_dim = 32
    inner_channels = (32, 24)     # block 0: identity residual, block 1: 1x1 downsample
    num_outs = 8
    kernel_size = 3

    key = jax.random.PRNGKey(0)
    key, k_params, k_feat = jax.random.split(key, 3)
    params = init_params(k_params, input_dim, inner_channels, num_outs, kernel_size)
    features = jax.random.normal(k_feat, (B, T, input_dim), jnp.float32)

    ref = ref_forward(params, features)

    # t_tile=8 exercises the streaming causal-carry path (2 T-tiles);
    # t_tile=T exercises the single-tile path.  Tolerance covers bf16 MXU inputs.
    for tt in (8, T):
        out = jax.block_until_ready(tcn_head_forward(params, features, t_tile=tt))
        assert out.shape == (B, T, num_outs), out.shape
        err = float(jnp.max(jnp.abs(out - ref)))
        assert jnp.allclose(out, ref, atol=5e-2, rtol=5e-2), (tt, err)

    print("KERNEL_OK")
</pallas_src>

<mosaic_0001>
module attributes {stable_mosaic.version = 11 : i64} {
  func.func @_fused_tcn_kernel(%arg0: i32, %arg1: i32, %arg2: memref<1x8x32xf32, #tpu.memory_space<vmem>>, %arg3: memref<96x32xbf16, #tpu.memory_space<vmem>>, %arg4: memref<1x32xf32, #tpu.memory_space<vmem>>, %arg5: memref<96x32xbf16, #tpu.memory_space<vmem>>, %arg6: memref<1x32xf32, #tpu.memory_space<vmem>>, %arg7: memref<96x24xbf16, #tpu.memory_space<vmem>>, %arg8: memref<1x24xf32, #tpu.memory_space<vmem>>, %arg9: memref<72x24xbf16, #tpu.memory_space<vmem>>, %arg10: memref<1x24xf32, #tpu.memory_space<vmem>>, %arg11: memref<32x24xbf16, #tpu.memory_space<vmem>>, %arg12: memref<1x24xf32, #tpu.memory_space<vmem>>, %arg13: memref<24x128xbf16, #tpu.memory_space<vmem>>, %arg14: memref<1x128xf32, #tpu.memory_space<vmem>>, %arg15: memref<1x8x128xf32, #tpu.memory_space<vmem>>, %arg16: memref<2x32xf32, #tpu.memory_space<vmem>>, %arg17: memref<2x32xf32, #tpu.memory_space<vmem>>, %arg18: memref<4x32xf32, #tpu.memory_space<vmem>>, %arg19: memref<4x24xf32, #tpu.memory_space<vmem>>) attributes {dimension_semantics = [#tpu.dimension_semantics<parallel>, #tpu.dimension_semantics<arbitrary>], iteration_bounds = array<i64: 2, 2>, scalar_prefetch = 0 : i64, scratch_operands = 4 : i64, tpu.core_type = #tpu.core_type<tc>, window_params = [{transform_indices = @transform_0, window_bounds = array<i64: 1, 8, 32>}, {pipeline_mode = #tpu.pipeline_mode<synchronous>, transform_indices = @transform_1, window_bounds = array<i64: 96, 32>}, {pipeline_mode = #tpu.pipeline_mode<synchronous>, transform_indices = @transform_2, window_bounds = array<i64: 1, 32>}, {pipeline_mode = #tpu.pipeline_mode<synchronous>, transform_indices = @transform_3, window_bounds = array<i64: 96, 32>}, {pipeline_mode = #tpu.pipeline_mode<synchronous>, transform_indices = @transform_4, window_bounds = array<i64: 1, 32>}, {pipeline_mode = #tpu.pipeline_mode<synchronous>, transform_indices = @transform_5, window_bounds = array<i64: 96, 24>}, {pipeline_mode = #tpu.pipeline_mode<synchronous>, transform_indices = @transform_6, window_bounds = array<i64: 1, 24>}, {pipeline_mode = #tpu.pipeline_mode<synchronous>, transform_indices = @transform_7, window_bounds = array<i64: 72, 24>}, {pipeline_mode = #tpu.pipeline_mode<synchronous>, transform_indices = @transform_8, window_bounds = array<i64: 1, 24>}, {pipeline_mode = #tpu.pipeline_mode<synchronous>, transform_indices = @transform_9, window_bounds = array<i64: 32, 24>}, {pipeline_mode = #tpu.pipeline_mode<synchronous>, transform_indices = @transform_10, window_bounds = array<i64: 1, 24>}, {pipeline_mode = #tpu.pipeline_mode<synchronous>, transform_indices = @transform_11, window_bounds = array<i64: 24, 128>}, {pipeline_mode = #tpu.pipeline_mode<synchronous>, transform_indices = @transform_12, window_bounds = array<i64: 1, 128>}, {transform_indices = @transform_13, window_bounds = array<i64: 1, 8, 128>}]} {
    %c0_i32 = arith.constant 0 : i32
    %0 = arith.cmpi eq, %arg1, %c0_i32 : i32
    %1 = arith.extui %0 : i1 to i32
    %c0_i32_0 = arith.constant 0 : i32
    %2 = arith.cmpi ne, %1, %c0_i32_0 : i32
    scf.if %2 {
      %cst_57 = arith.constant 0.000000e+00 : f32
      %98 = vector.broadcast %cst_57 : f32 to vector<2x32xf32>
      %c0_58 = arith.constant 0 : index
      %c0_59 = arith.constant 0 : index
      %99 = vector.load %arg16[%c0_58, %c0_59] : memref<2x32xf32, #tpu.memory_space<vmem>>, vector<2x32xf32>
      tpu.vector_store %arg16[%c0_58, %c0_59], %98 {strides = array<i32>} : memref<2x32xf32, #tpu.memory_space<vmem>>, vector<2x32xf32>,
      %cst_60 = arith.constant 0.000000e+00 : f32
      %100 = vector.broadcast %cst_60 : f32 to vector<2x32xf32>
      %c0_61 = arith.constant 0 : index
      %c0_62 = arith.constant 0 : index
      %101 = vector.load %arg17[%c0_61, %c0_62] : memref<2x32xf32, #tpu.memory_space<vmem>>, vector<2x32xf32>
      tpu.vector_store %arg17[%c0_61, %c0_62], %100 {strides = array<i32>} : memref<2x32xf32, #tpu.memory_space<vmem>>, vector<2x32xf32>,
      %cst_63 = arith.constant 0.000000e+00 : f32
      %102 = vector.broadcast %cst_63 : f32 to vector<4x32xf32>
      %c0_64 = arith.constant 0 : index
      %c0_65 = arith.constant 0 : index
      %103 = vector.load %arg18[%c0_64, %c0_65] : memref<4x32xf32, #tpu.memory_space<vmem>>, vector<4x32xf32>
      tpu.vector_store %arg18[%c0_64, %c0_65], %102 {strides = array<i32>} : memref<4x32xf32, #tpu.memory_space<vmem>>, vector<4x32xf32>,
      %cst_66 = arith.constant 0.000000e+00 : f32
      %104 = vector.broadcast %cst_66 : f32 to vector<4x24xf32>
      %c0_67 = arith.constant 0 : index
      %c0_68 = arith.constant 0 : index
      %105 = vector.load %arg19[%c0_67, %c0_68] : memref<4x24xf32, #tpu.memory_space<vmem>>, vector<4x24xf32>
      tpu.vector_store %arg19[%c0_67, %c0_68], %104 {strides = array<i32>} : memref<4x24xf32, #tpu.memory_space<vmem>>, vector<4x24xf32>,
    } else {
    }
    %c0 = arith.constant 0 : index
    %c0_1 = arith.constant 0 : index
    %c0_2 = arith.constant 0 : index
    %3 = vector.load %arg2[%c0, %c0_1, %c0_2] : memref<1x8x32xf32, #tpu.memory_space<vmem>>, vector<1x8x32xf32>
    %4 = vector.shape_cast %3 : vector<1x8x32xf32> to vector<8x32xf32>
    %c0_3 = arith.constant 0 : index
    %c0_4 = arith.constant 0 : index
    %5 = vector.load %arg16[%c0_3, %c0_4] : memref<2x32xf32, #tpu.memory_space<vmem>>, vector<2x32xf32>
    %6 = tpu.concatenate %5, %4 in 0 : vector<2x32xf32>, vector<8x32xf32> -> vector<10x32xf32>
    %7 = vector.extract_strided_slice %6 {offsets = [8, 0], sizes = [2, 32], strides = [1, 1]} : vector<10x32xf32> to vector<2x32xf32>
    %c0_5 = arith.constant 0 : index
    %c0_6 = arith.constant 0 : index
    %8 = vector.load %arg16[%c0_5, %c0_6] : memref<2x32xf32, #tpu.memory_space<vmem>>, vector<2x32xf32>
    tpu.vector_store %arg16[%c0_5, %c0_6], %7 {strides = array<i32>} : memref<2x32xf32, #tpu.memory_space<vmem>>, vector<2x32xf32>,
    %9 = vector.extract_strided_slice %6 {offsets = [0, 0], sizes = [8, 32], strides = [1, 1]} : vector<10x32xf32> to vector<8x32xf32>
    %10 = arith.truncf %9 : vector<8x32xf32> to vector<8x32xbf16>
    %11 = vector.extract_strided_slice %6 {offsets = [1, 0], sizes = [8, 32], strides = [1, 1]} : vector<10x32xf32> to vector<8x32xf32>
    %12 = arith.truncf %11 : vector<8x32xf32> to vector<8x32xbf16>
    %13 = vector.extract_strided_slice %6 {offsets = [2, 0], sizes = [8, 32], strides = [1, 1]} : vector<10x32xf32> to vector<8x32xf32>
    %14 = arith.truncf %13 : vector<8x32xf32> to vector<8x32xbf16>
    %15 = tpu.concatenate %10, %12, %14 in 1 : vector<8x32xbf16>, vector<8x32xbf16>, vector<8x32xbf16> -> vector<8x96xbf16>
    %c0_7 = arith.constant 0 : index
    %c0_8 = arith.constant 0 : index
    %16 = vector.load %arg3[%c0_7, %c0_8] : memref<96x32xbf16, #tpu.memory_space<vmem>>, vector<96x32xbf16>
    %cst = arith.constant dense<0.000000e+00> : vector<8x32xf32>
    %17 = tpu.matmul %15, %16, %cst {dimension_numbers = #tpu.dot_dimension_numbers<[1], [0], [0], [1], [0, 0, 1, 1], [], []>} : vector<8x96xbf16>, vector<96x32xbf16>, vector<8x32xf32> -> vector<8x32xf32>
    %c0_9 = arith.constant 0 : index
    %c0_10 = arith.constant 0 : index
    %18 = vector.load %arg4[%c0_9, %c0_10] : memref<1x32xf32, #tpu.memory_space<vmem>>, vector<1x32xf32>
    %19 = vector.broadcast %18 : vector<1x32xf32> to vector<8x32xf32>
    %20 = arith.addf %17, %19 : vector<8x32xf32>
    %cst_11 = arith.constant 0.000000e+00 : f32
    %21 = vector.broadcast %cst_11 : f32 to vector<8x32xf32>
    %22 = arith.maximumf %20, %21 : vector<8x32xf32>
    %c0_12 = arith.constant 0 : index
    %c0_13 = arith.constant 0 : index
    %23 = vector.load %arg17[%c0_12, %c0_13] : memref<2x32xf32, #tpu.memory_space<vmem>>, vector<2x32xf32>
    %24 = tpu.concatenate %23, %22 in 0 : vector<2x32xf32>, vector<8x32xf32> -> vector<10x32xf32>
    %25 = vector.extract_strided_slice %24 {offsets = [8, 0], sizes = [2, 32], strides = [1, 1]} : vector<10x32xf32> to vector<2x32xf32>
    %c0_14 = arith.constant 0 : index
    %c0_15 = arith.constant 0 : index
    %26 = vector.load %arg17[%c0_14, %c0_15] : memref<2x32xf32, #tpu.memory_space<vmem>>, vector<2x32xf32>
    tpu.vector_store %arg17[%c0_14, %c0_15], %25 {strides = array<i32>} : memref<2x32xf32, #tpu.memory_space<vmem>>, vector<2x32xf32>,
    %27 = vector.extract_strided_slice %24 {offsets = [0, 0], sizes = [8, 32], strides = [1, 1]} : vector<10x32xf32> to vector<8x32xf32>
    %28 = arith.truncf %27 : vector<8x32xf32> to vector<8x32xbf16>
    %29 = vector.extract_strided_slice %24 {offsets = [1, 0], sizes = [8, 32], strides = [1, 1]} : vector<10x32xf32> to vector<8x32xf32>
    %30 = arith.truncf %29 : vector<8x32xf32> to vector<8x32xbf16>
    %31 = vector.extract_strided_slice %24 {offsets = [2, 0], sizes = [8, 32], strides = [1, 1]} : vector<10x32xf32> to vector<8x32xf32>
    %32 = arith.truncf %31 : vector<8x32xf32> to vector<8x32xbf16>
    %33 = tpu.concatenate %28, %30, %32 in 1 : vector<8x32xbf16>, vector<8x32xbf16>, vector<8x32xbf16> -> vector<8x96xbf16>
    %c0_16 = arith.constant 0 : index
    %c0_17 = arith.constant 0 : index
    %34 = vector.load %arg5[%c0_16, %c0_17] : memref<96x32xbf16, #tpu.memory_space<vmem>>, vector<96x32xbf16>
    %cst_18 = arith.constant dense<0.000000e+00> : vector<8x32xf32>
    %35 = tpu.matmul %33, %34, %cst_18 {dimension_numbers = #tpu.dot_dimension_numbers<[1], [0], [0], [1], [0, 0, 1, 1], [], []>} : vector<8x96xbf16>, vector<96x32xbf16>, vector<8x32xf32> -> vector<8x32xf32>
    %c0_19 = arith.constant 0 : index
    %c0_20 = arith.constant 0 : index
    %36 = vector.load %arg6[%c0_19, %c0_20] : memref<1x32xf32, #tpu.memory_space<vmem>>, vector<1x32xf32>
    %37 = vector.broadcast %36 : vector<1x32xf32> to vector<8x32xf32>
    %38 = arith.addf %35, %37 : vector<8x32xf32>
    %cst_21 = arith.constant 0.000000e+00 : f32
    %39 = vector.broadcast %cst_21 : f32 to vector<8x32xf32>
    %40 = arith.maximumf %38, %39 : vector<8x32xf32>
    %41 = arith.addf %40, %4 : vector<8x32xf32>
    %cst_22 = arith.constant 0.000000e+00 : f32
    %42 = vector.broadcast %cst_22 : f32 to vector<8x32xf32>
    %43 = arith.maximumf %41, %42 : vector<8x32xf32>
    %c0_23 = arith.constant 0 : index
    %c0_24 = arith.constant 0 : index
    %44 = vector.load %arg18[%c0_23, %c0_24] : memref<4x32xf32, #tpu.memory_space<vmem>>, vector<4x32xf32>
    %45 = tpu.concatenate %44, %43 in 0 : vector<4x32xf32>, vector<8x32xf32> -> vector<12x32xf32>
    %46 = vector.extract_strided_slice %45 {offsets = [8, 0], sizes = [4, 32], strides = [1, 1]} : vector<12x32xf32> to vector<4x32xf32>
    %c0_25 = arith.constant 0 : index
    %c0_26 = arith.constant 0 : index
    %47 = vector.load %arg18[%c0_25, %c0_26] : memref<4x32xf32, #tpu.memory_space<vmem>>, vector<4x32xf32>
    tpu.vector_store %arg18[%c0_25, %c0_26], %46 {strides = array<i32>} : memref<4x32xf32, #tpu.memory_space<vmem>>, vector<4x32xf32>,
    %48 = vector.extract_strided_slice %45 {offsets = [0, 0], sizes = [8, 32], strides = [1, 1]} : vector<12x32xf32> to vector<8x32xf32>
    %49 = arith.truncf %48 : vector<8x32xf32> to vector<8x32xbf16>
    %50 = vector.extract_strided_slice %45 {offsets = [2, 0], sizes = [8, 32], strides = [1, 1]} : vector<12x32xf32> to vector<8x32xf32>
    %51 = arith.truncf %50 : vector<8x32xf32> to vector<8x32xbf16>
    %52 = vector.extract_strided_slice %45 {offsets = [4, 0], sizes = [8, 32], strides = [1, 1]} : vector<12x32xf32> to vector<8x32xf32>
    %53 = arith.truncf %52 : vector<8x32xf32> to vector<8x32xbf16>
    %54 = tpu.concatenate %49, %51, %53 in 1 : vector<8x32xbf16>, vector<8x32xbf16>, vector<8x32xbf16> -> vector<8x96xbf16>
    %c0_27 = arith.constant 0 : index
    %c0_28 = arith.constant 0 : index
    %55 = vector.load %arg7[%c0_27, %c0_28] : memref<96x24xbf16, #tpu.memory_space<vmem>>, vector<96x24xbf16>
    %cst_29 = arith.constant dense<0.000000e+00> : vector<8x24xf32>
    %56 = tpu.matmul %54, %55, %cst_29 {dimension_numbers = #tpu.dot_dimension_numbers<[1], [0], [0], [1], [0, 0, 1, 1], [], []>} : vector<8x96xbf16>, vector<96x24xbf16>, vector<8x24xf32> -> vector<8x24xf32>
    %c0_30 = arith.constant 0 : index
    %c0_31 = arith.constant 0 : index
    %57 = vector.load %arg8[%c0_30, %c0_31] : memref<1x24xf32, #tpu.memory_space<vmem>>, vector<1x24xf32>
    %58 = vector.broadcast %57 : vector<1x24xf32> to vector<8x24xf32>
    %59 = arith.addf %56, %58 : vector<8x24xf32>
    %cst_32 = arith.constant 0.000000e+00 : f32
    %60 = vector.broadcast %cst_32 : f32 to vector<8x24xf32>
    %61 = arith.maximumf %59, %60 : vector<8x24xf32>
    %c0_33 = arith.constant 0 : index
    %c0_34 = arith.constant 0 : index
    %62 = vector.load %arg19[%c0_33, %c0_34] : memref<4x24xf32, #tpu.memory_space<vmem>>, vector<4x24xf32>
    %63 = tpu.concatenate %62, %61 in 0 : vector<4x24xf32>, vector<8x24xf32> -> vector<12x24xf32>
    %64 = vector.extract_strided_slice %63 {offsets = [8, 0], sizes = [4, 24], strides = [1, 1]} : vector<12x24xf32> to vector<4x24xf32>
    %c0_35 = arith.constant 0 : index
    %c0_36 = arith.constant 0 : index
    %65 = vector.load %arg19[%c0_35, %c0_36] : memref<4x24xf32, #tpu.memory_space<vmem>>, vector<4x24xf32>
    tpu.vector_store %arg19[%c0_35, %c0_36], %64 {strides = array<i32>} : memref<4x24xf32, #tpu.memory_space<vmem>>, vector<4x24xf32>,
    %66 = vector.extract_strided_slice %63 {offsets = [0, 0], sizes = [8, 24], strides = [1, 1]} : vector<12x24xf32> to vector<8x24xf32>
    %67 = arith.truncf %66 : vector<8x24xf32> to vector<8x24xbf16>
    %68 = vector.extract_strided_slice %63 {offsets = [2, 0], sizes = [8, 24], strides = [1, 1]} : vector<12x24xf32> to vector<8x24xf32>
    %69 = arith.truncf %68 : vector<8x24xf32> to vector<8x24xbf16>
    %70 = vector.extract_strided_slice %63 {offsets = [4, 0], sizes = [8, 24], strides = [1, 1]} : vector<12x24xf32> to vector<8x24xf32>
    %71 = arith.truncf %70 : vector<8x24xf32> to vector<8x24xbf16>
    %72 = tpu.concatenate %67, %69, %71 in 1 : vector<8x24xbf16>, vector<8x24xbf16>, vector<8x24xbf16> -> vector<8x72xbf16>
    %c0_37 = arith.constant 0 : index
    %c0_38 = arith.constant 0 : index
    %73 = vector.load %arg9[%c0_37, %c0_38] : memref<72x24xbf16, #tpu.memory_space<vmem>>, vector<72x24xbf16>
    %cst_39 = arith.constant dense<0.000000e+00> : vector<8x24xf32>
    %74 = tpu.matmul %72, %73, %cst_39 {dimension_numbers = #tpu.dot_dimension_numbers<[1], [0], [0], [1], [0, 0, 1, 1], [], []>} : vector<8x72xbf16>, vector<72x24xbf16>, vector<8x24xf32> -> vector<8x24xf32>
    %c0_40 = arith.constant 0 : index
    %c0_41 = arith.constant 0 : index
    %75 = vector.load %arg10[%c0_40, %c0_41] : memref<1x24xf32, #tpu.memory_space<vmem>>, vector<1x24xf32>
    %76 = vector.broadcast %75 : vector<1x24xf32> to vector<8x24xf32>
    %77 = arith.addf %74, %76 : vector<8x24xf32>
    %cst_42 = arith.constant 0.000000e+00 : f32
    %78 = vector.broadcast %cst_42 : f32 to vector<8x24xf32>
    %79 = arith.maximumf %77, %78 : vector<8x24xf32>
    %80 = arith.truncf %43 : vector<8x32xf32> to vector<8x32xbf16>
    %c0_43 = arith.constant 0 : index
    %c0_44 = arith.constant 0 : index
    %81 = vector.load %arg11[%c0_43, %c0_44] : memref<32x24xbf16, #tpu.memory_space<vmem>>, vector<32x24xbf16>
    %cst_45 = arith.constant dense<0.000000e+00> : vector<8x24xf32>
    %82 = tpu.matmul %80, %81, %cst_45 {dimension_numbers = #tpu.dot_dimension_numbers<[1], [0], [0], [1], [0, 0, 1, 1], [], []>} : vector<8x32xbf16>, vector<32x24xbf16>, vector<8x24xf32> -> vector<8x24xf32>
    %c0_46 = arith.constant 0 : index
    %c0_47 = arith.constant 0 : index
    %83 = vector.load %arg12[%c0_46, %c0_47] : memref<1x24xf32, #tpu.memory_space<vmem>>, vector<1x24xf32>
    %84 = vector.broadcast %83 : vector<1x24xf32> to vector<8x24xf32>
    %85 = arith.addf %82, %84 : vector<8x24xf32>
    %86 = arith.addf %79, %85 : vector<8x24xf32>
    %cst_48 = arith.constant 0.000000e+00 : f32
    %87 = vector.broadcast %cst_48 : f32 to vector<8x24xf32>
    %88 = arith.maximumf %86, %87 : vector<8x24xf32>
    %89 = arith.truncf %88 : vector<8x24xf32> to vector<8x24xbf16>
    %c0_49 = arith.constant 0 : index
    %c0_50 = arith.constant 0 : index
    %90 = vector.load %arg13[%c0_49, %c0_50] : memref<24x128xbf16, #tpu.memory_space<vmem>>, vector<24x128xbf16>
    %cst_51 = arith.constant dense<0.000000e+00> : vector<8x128xf32>
    %91 = tpu.matmul %89, %90, %cst_51 {dimension_numbers = #tpu.dot_dimension_numbers<[1], [0], [0], [1], [0, 0, 1, 1], [], []>} : vector<8x24xbf16>, vector<24x128xbf16>, vector<8x128xf32> -> vector<8x128xf32>
    %c0_52 = arith.constant 0 : index
    %c0_53 = arith.constant 0 : index
    %92 = vector.load %arg14[%c0_52, %c0_53] : memref<1x128xf32, #tpu.memory_space<vmem>>, vector<1x128xf32>
    %93 = vector.broadcast %92 : vector<1x128xf32> to vector<8x128xf32>
    %94 = arith.addf %91, %93 : vector<8x128xf32>
    %c0_54 = arith.constant 0 : index
    %c0_55 = arith.constant 0 : index
    %c0_56 = arith.constant 0 : index
    %95 = vector.load %arg15[%c0_54, %c0_55, %c0_56] : memref<1x8x128xf32, #tpu.memory_space<vmem>>, vector<1x8x128xf32>
    %96 = vector.shape_cast %95 : vector<1x8x128xf32> to vector<8x128xf32>
    %97 = vector.shape_cast %94 : vector<8x128xf32> to vector<1x8x128xf32>
    tpu.vector_store %arg15[%c0_54, %c0_55, %c0_56], %97 {strides = array<i32>} : memref<1x8x128xf32, #tpu.memory_space<vmem>>, vector<1x8x128xf32>,
    return
  }
  func.func @transform_0(%arg0: i32, %arg1: i32) -> (i32, i32, i32) {
    %c0_i32 = arith.constant 0 : i32
    %c0_i32_0 = arith.constant 0 : i32
    return %arg0, %arg1, %c0_i32 : i32, i32, i32
  }
  func.func @transform_1(%arg0: i32, %arg1: i32) -> (i32, i32) {
    %c0_i32 = arith.constant 0 : i32
    %c0_i32_0 = arith.constant 0 : i32
    %c0_i32_1 = arith.constant 0 : i32
    return %c0_i32, %c0_i32_0 : i32, i32
  }
  func.func @transform_2(%arg0: i32, %arg1: i32) -> (i32, i32) {
    %c0_i32 = arith.constant 0 : i32
    %c0_i32_0 = arith.constant 0 : i32
    %c0_i32_1 = arith.constant 0 : i32
    return %c0_i32, %c0_i32_0 : i32, i32
  }
  func.func @transform_3(%arg0: i32, %arg1: i32) -> (i32, i32) {
    %c0_i32 = arith.constant 0 : i32
    %c0_i32_0 = arith.constant 0 : i32
    %c0_i32_1 = arith.constant 0 : i32
    return %c0_i32, %c0_i32_0 : i32, i32
  }
  func.func @transform_4(%arg0: i32, %arg1: i32) -> (i32, i32) {
    %c0_i32 = arith.constant 0 : i32
    %c0_i32_0 = arith.constant 0 : i32
    %c0_i32_1 = arith.constant 0 : i32
    return %c0_i32, %c0_i32_0 : i32, i32
  }
  func.func @transform_5(%arg0: i32, %arg1: i32) -> (i32, i32) {
    %c0_i32 = arith.constant 0 : i32
    %c0_i32_0 = arith.constant 0 : i32
    %c0_i32_1 = arith.constant 0 : i32
    return %c0_i32, %c0_i32_0 : i32, i32
  }
  func.func @transform_6(%arg0: i32, %arg1: i32) -> (i32, i32) {
    %c0_i32 = arith.constant 0 : i32
    %c0_i32_0 = arith.constant 0 : i32
    %c0_i32_1 = arith.constant 0 : i32
    return %c0_i32, %c0_i32_0 : i32, i32
  }
  func.func @transform_7(%arg0: i32, %arg1: i32) -> (i32, i32) {
    %c0_i32 = arith.constant 0 : i32
    %c0_i32_0 = arith.constant 0 : i32
    %c0_i32_1 = arith.constant 0 : i32
    return %c0_i32, %c0_i32_0 : i32, i32
  }
  func.func @transform_8(%arg0: i32, %arg1: i32) -> (i32, i32) {
    %c0_i32 = arith.constant 0 : i32
    %c0_i32_0 = arith.constant 0 : i32
    %c0_i32_1 = arith.constant 0 : i32
    return %c0_i32, %c0_i32_0 : i32, i32
  }
  func.func @transform_9(%arg0: i32, %arg1: i32) -> (i32, i32) {
    %c0_i32 = arith.constant 0 : i32
    %c0_i32_0 = arith.constant 0 : i32
    %c0_i32_1 = arith.constant 0 : i32
    return %c0_i32, %c0_i32_0 : i32, i32
  }
  func.func @transform_10(%arg0: i32, %arg1: i32) -> (i32, i32) {
    %c0_i32 = arith.constant 0 : i32
    %c0_i32_0 = arith.constant 0 : i32
    %c0_i32_1 = arith.constant 0 : i32
    return %c0_i32, %c0_i32_0 : i32, i32
  }
  func.func @transform_11(%arg0: i32, %arg1: i32) -> (i32, i32) {
    %c0_i32 = arith.constant 0 : i32
    %c0_i32_0 = arith.constant 0 : i32
    %c0_i32_1 = arith.constant 0 : i32
    return %c0_i32, %c0_i32_0 : i32, i32
  }
  func.func @transform_12(%arg0: i32, %arg1: i32) -> (i32, i32) {
    %c0_i32 = arith.constant 0 : i32
    %c0_i32_0 = arith.constant 0 : i32
    %c0_i32_1 = arith.constant 0 : i32
    return %c0_i32, %c0_i32_0 : i32, i32
  }
  func.func @transform_13(%arg0: i32, %arg1: i32) -> (i32, i32, i32) {
    %c0_i32 = arith.constant 0 : i32
    %c0_i32_0 = arith.constant 0 : i32
    return %arg0, %arg1, %c0_i32 : i32, i32, i32
  }
}

</mosaic_0001>

<llo_original>
// kernel: tpu_custom_call.1
$region0: #{tpu_custom_call.1}
  #allocation0 [shape = 'u32[]', space=smem, size = 0x4, offset = 0x4, fixed_abs, tag = 'smem constant byte address 0x4 - core index']
  #allocation1 [shape = 'u32[144,128]{1,0:T(1,128)}', space=vmem, size = 0x12000, scoped, tag = 'internal scratch']
  #allocation2 [shape = 'f32[2,32]{1,0:T(2,128)}', space=vmem, size = 0x400, scoped, tag = 'scratch operand']
  #allocation3 [shape = 'f32[2,32]{1,0:T(2,128)}', space=vmem, size = 0x400, scoped, tag = 'scratch operand']
  #allocation4 [shape = 'f32[4,32]{1,0:T(4,128)}', space=vmem, size = 0x800, scoped, tag = 'scratch operand']
  #allocation5 [shape = 'f32[4,24]{1,0:T(4,128)}', space=vmem, size = 0x800, scoped, tag = 'scratch operand']
  %s0 = inlined_call_operand.vmem [shape: f32[2,16,32], index: 0, kind: input, shape index: {}]
  %s1 = inlined_call_operand.vmem [shape: bf16[96,32], index: 1, kind: input, shape index: {}]
  %s2 = inlined_call_operand.vmem [shape: f32[1,32], index: 2, kind: input, shape index: {}]
  %s3 = inlined_call_operand.vmem [shape: bf16[96,32], index: 3, kind: input, shape index: {}]
  %s4 = inlined_call_operand.vmem [shape: f32[1,32], index: 4, kind: input, shape index: {}]
  %s5 = inlined_call_operand.vmem [shape: bf16[96,24], index: 5, kind: input, shape index: {}]
  %s6 = inlined_call_operand.vmem [shape: f32[1,24], index: 6, kind: input, shape index: {}]
  %s7 = inlined_call_operand.vmem [shape: bf16[72,24], index: 7, kind: input, shape index: {}]
  %s8 = inlined_call_operand.vmem [shape: f32[1,24], index: 8, kind: input, shape index: {}]
  %s9 = inlined_call_operand.vmem [shape: bf16[32,24], index: 9, kind: input, shape index: {}]
  %s10 = inlined_call_operand.vmem [shape: f32[1,24], index: 10, kind: input, shape index: {}]
  %s11 = inlined_call_operand.vmem [shape: bf16[24,128], index: 11, kind: input, shape index: {}]
  %s12 = inlined_call_operand.vmem [shape: f32[1,128], index: 12, kind: input, shape index: {}]
  %s13 = inlined_call_operand.hbm [shape: f32[2,16,128], index: 13, kind: output, shape index: {}]
  %s14 = sld [smem:[#allocation0]]
  $region89: #{tpu_custom_call.1} parent=0
    _
  %s16 = ssub.s32 1, %s14
  %s17 = scalar_select 0, %s16, %s14
  $region1: #{tpu_custom_call.1} parent=0
    #allocation6 [shape = 'u8[8192]{0}', space=vmem, size = 0x2000, scoped, tag = 'output window, operand 0']
    #allocation7 [shape = 's32[2]{0}', space=sflag, size = 0x8, scoped, tag = 'scoped memory for tpu_custom_call.1']
    %18 = vsyncpa [#allocation7], 0
    %s19 = scalar_lea.sflag [#allocation7], 1
    %20 = vsyncpa %s19, 0
    loop: start=0, step=1, limit=6
    $region2: #{tpu_custom_call.1} parent=1 // loop_pre_header
      _
    $region3: #{tpu_custom_call.1} parent=1 // loop_header
      %s22 = sphi 0, %s26
      %p23 = scmp.ge.s32.totalorder %s22, 6
      %s29 = sphi 0, %s41
      %s30 = sphi 0, %s37
      %s31 = sphi 0, %s29
      %s32 = sphi 0, %s30
      %s33 = sphi 0, %s31
      %s34 = sphi 0, %s32
      %s46 = sphi 0, %s48
      %s49 = sphi 0, %s46
      %s50 = sphi 0, %s49
      %s66 = sphi 0, %s50
      %s70 = sphi 0, %s70
      %s72 = sphi 0, %s70
      %s73 = sphi 0, %s72
      %s87 = sphi 0, %s73
      %s91 = sphi 0, %s91
      %s93 = sphi 0, %s91
      %s94 = sphi 0, %s93
      %s108 = sphi 0, %s94
      %s112 = sphi 0, %s112
      %s114 = sphi 0, %s112
      %s115 = sphi 0, %s114
      %s129 = sphi 0, %s115
      %s133 = sphi 0, %s133
      %s135 = sphi 0, %s133
      %s136 = sphi 0, %s135
      %s150 = sphi 0, %s136
      %s154 = sphi 0, %s154
      %s156 = sphi 0, %s154
      %s157 = sphi 0, %s156
      %s171 = sphi 0, %s157
      %s175 = sphi 0, %s175
      %s177 = sphi 0, %s175
      %s178 = sphi 0, %s177
      %s192 = sphi 0, %s178
      %s196 = sphi 0, %s196
      %s198 = sphi 0, %s196
      %s199 = sphi 0, %s198
      %s213 = sphi 0, %s199
      %s217 = sphi 0, %s217
      %s219 = sphi 0, %s217
      %s220 = sphi 0, %s219
      %s234 = sphi 0, %s220
      %s238 = sphi 0, %s238
      %s240 = sphi 0, %s238
      %s241 = sphi 0, %s240
      %s255 = sphi 0, %s241
      %s259 = sphi 0, %s259
      %s261 = sphi 0, %s259
      %s262 = sphi 0, %s261
      %s276 = sphi 0, %s262
      %s280 = sphi 0, %s280
      %s282 = sphi 0, %s280
      %s283 = sphi 0, %s282
      %s297 = sphi 0, %s283
      %s301 = sphi 0, %s301
      %s303 = sphi 0, %s301
      %s304 = sphi 0, %s303
      %s318 = sphi 0, %s304
      %s326 = sphi 0, %s328
      %s329 = sphi 0, %s326
      %s330 = sphi 0, %s329
      %s346 = sphi 0, %s330
    $region4: #{tpu_custom_call.1} parent=1 // loop_header_branch
      %25 = sbr.rel (%p23) target = $region8
    $region5: #{tpu_custom_call.1} parent=1 // loop_body
      %s27 = ssub.s32 %s22, 1
      %s28 = ssub.s32 %s22, 2
      %s35 = sadd.s32 1, %s30
      %p36 = scmp.ge.s32.totalorder %s35, 2
      %s37 = scalar_select %p36, 0, %s35
      %s38 = sadd.s32 1, %s29
      %s39 = scalar_select %p36, %s38, %s29
      %p40 = scmp.ge.s32.totalorder %s39, 2
      %s41 = scalar_select %p40, 0, %s39
      %s42 = ssub.s32 %s29, %s41
      %s43 = ssub.s32 %s30, %s37
      %s44 = sor.u32 %s42, %s43
      %p45 = scmp.eq.s32.totalorder %s44, 0
      %s47 = sadd.s32 %s46, 1
      %s48 = scalar_select %p45, %s46, %s47
      %p51 = pneg %p45
      %p52 = scmp.eq.s32.totalorder %s22, 3
      %p53 = por %p51, %p52
      %p54 = scmp.ne.s32.totalorder %s46, %s49
      %p55 = scmp.eq.s32.totalorder %s22, 0
      %p56 = por %p54, %p55
      %p57 = scmp.ne.s32.totalorder %s46, %s49
      %p58 = scmp.eq.s32.totalorder %s27, 3
      %p59 = por %p57, %p58
      %p60 = scmp.ne.s32.totalorder %s49, %s50
      %p61 = scmp.eq.s32.totalorder %s27, 0
      %p62 = por %p60, %p61
      %p63 = scmp.ne.s32.totalorder %s49, %s50
      %p64 = scmp.eq.s32.totalorder %s28, 3
      %p65 = por %p63, %p64
      %p67 = scmp.ne.s32.totalorder %s50, %s66
      %p68 = scmp.eq.s32.totalorder %s28, 0
      %p69 = por %p67, %p68
      %s71 = sadd.s32 %s70, 1
      %p74 = scmp.eq.s32.totalorder %s22, 3
      %p75 = scmp.ne.s32.totalorder %s70, %s72
      %p76 = scmp.eq.s32.totalorder %s22, 0
      %p77 = por %p75, %p76
      %p78 = scmp.ne.s32.totalorder %s70, %s72
      %p79 = scmp.eq.s32.totalorder %s27, 3
      %p80 = por %p78, %p79
      %p81 = scmp.ne.s32.totalorder %s72, %s73
      %p82 = scmp.eq.s32.totalorder %s27, 0
      %p83 = por %p81, %p82
      %p84 = scmp.ne.s32.totalorder %s72, %s73
      %p85 = scmp.eq.s32.totalorder %s28, 3
      %p86 = por %p84, %p85
      %p88 = scmp.ne.s32.totalorder %s73, %s87
      %p89 = scmp.eq.s32.totalorder %s28, 0
      %p90 = por %p88, %p89
      %s92 = sadd.s32 %s91, 1
      %p95 = scmp.eq.s32.totalorder %s22, 3
      %p96 = scmp.ne.s32.totalorder %s91, %s93
      %p97 = scmp.eq.s32.totalorder %s22, 0
      %p98 = por %p96, %p97
      %p99 = scmp.ne.s32.totalorder %s91, %s93
      %p100 = scmp.eq.s32.totalorder %s27, 3
      %p101 = por %p99, %p100
      %p102 = scmp.ne.s32.totalorder %s93, %s94
      %p103 = scmp.eq.s32.totalorder %s27, 0
      %p104 = por %p102, %p103
      %p105 = scmp.ne.s32.totalorder %s93, %s94
      %p106 = scmp.eq.s32.totalorder %s28, 3
      %p107 = por %p105, %p106
      %p109 = scmp.ne.s32.totalorder %s94, %s108
      %p110 = scmp.eq.s32.totalorder %s28, 0
      %p111 = por %p109, %p110
      %s113 = sadd.s32 %s112, 1
      %p116 = scmp.eq.s32.totalorder %s22, 3
      %p117 = scmp.ne.s32.totalorder %s112, %s114
      %p118 = scmp.eq.s32.totalorder %s22, 0
      %p119 = por %p117, %p118
      %p120 = scmp.ne.s32.totalorder %s112, %s114
      %p121 = scmp.eq.s32.totalorder %s27, 3
      %p122 = por %p120, %p121
      %p123 = scmp.ne.s32.totalorder %s114, %s115
      %p124 = scmp.eq.s32.totalorder %s27, 0
      %p125 = por %p123, %p124
      %p126 = scmp.ne.s32.totalorder %s114, %s115
      %p127 = scmp.eq.s32.totalorder %s28, 3
      %p128 = por %p126, %p127
      %p130 = scmp.ne.s32.totalorder %s115, %s129
      %p131 = scmp.eq.s32.totalorder %s28, 0
      %p132 = por %p130, %p131
      %s134 = sadd.s32 %s133, 1
      %p137 = scmp.eq.s32.totalorder %s22, 3
      %p138 = scmp.ne.s32.totalorder %s133, %s135
      %p139 = scmp.eq.s32.totalorder %s22, 0
      %p140 = por %p138, %p139
      %p141 = scmp.ne.s32.totalorder %s133, %s135
      %p142 = scmp.eq.s32.totalorder %s27, 3
      %p143 = por %p141, %p142
      %p144 = scmp.ne.s32.totalorder %s135, %s136
      %p145 = scmp.eq.s32.totalorder %s27, 0
      %p146 = por %p144, %p145
      %p147 = scmp.ne.s32.totalorder %s135, %s136
      %p148 = scmp.eq.s32.totalorder %s28, 3
      %p149 = por %p147, %p148
      %p151 = scmp.ne.s32.totalorder %s136, %s150
      %p152 = scmp.eq.s32.totalorder %s28, 0
      %p153 = por %p151, %p152
      %s155 = sadd.s32 %s154, 1
      %p158 = scmp.eq.s32.totalorder %s22, 3
      %p159 = scmp.ne.s32.totalorder %s154, %s156
      %p160 = scmp.eq.s32.totalorder %s22, 0
      %p161 = por %p159, %p160
      %p162 = scmp.ne.s32.totalorder %s154, %s156
      %p163 = scmp.eq.s32.totalorder %s27, 3
      %p164 = por %p162, %p163
      %p165 = scmp.ne.s32.totalorder %s156, %s157
      %p166 = scmp.eq.s32.totalorder %s27, 0
      %p167 = por %p165, %p166
      %p168 = scmp.ne.s32.totalorder %s156, %s157
      %p169 = scmp.eq.s32.totalorder %s28, 3
      %p170 = por %p168, %p169
      %p172 = scmp.ne.s32.totalorder %s157, %s171
      %p173 = scmp.eq.s32.totalorder %s28, 0
      %p174 = por %p172, %p173
      %s176 = sadd.s32 %s175, 1
      %p179 = scmp.eq.s32.totalorder %s22, 3
      %p180 = scmp.ne.s32.totalorder %s175, %s177
      %p181 = scmp.eq.s32.totalorder %s22, 0
      %p182 = por %p180, %p181
      %p183 = scmp.ne.s32.totalorder %s175, %s177
      %p184 = scmp.eq.s32.totalorder %s27, 3
      %p185 = por %p183, %p184
      %p186 = scmp.ne.s32.totalorder %s177, %s178
      %p187 = scmp.eq.s32.totalorder %s27, 0
      %p188 = por %p186, %p187
      %p189 = scmp.ne.s32.totalorder %s177, %s178
      %p190 = scmp.eq.s32.totalorder %s28, 3
      %p191 = por %p189, %p190
      %p193 = scmp.ne.s32.totalorder %s178, %s192
      %p194 = scmp.eq.s32.totalorder %s28, 0
      %p195 = por %p193, %p194
      %s197 = sadd.s32 %s196, 1
      %p200 = scmp.eq.s32.totalorder %s22, 3
      %p201 = scmp.ne.s32.totalorder %s196, %s198
      %p202 = scmp.eq.s32.totalorder %s22, 0
      %p203 = por %p201, %p202
      %p204 = scmp.ne.s32.totalorder %s196, %s198
      %p205 = scmp.eq.s32.totalorder %s27, 3
      %p206 = por %p204, %p205
      %p207 = scmp.ne.s32.totalorder %s198, %s199
      %p208 = scmp.eq.s32.totalorder %s27, 0
      %p209 = por %p207, %p208
      %p210 = scmp.ne.s32.totalorder %s198, %s199
      %p211 = scmp.eq.s32.totalorder %s28, 3
      %p212 = por %p210, %p211
      %p214 = scmp.ne.s32.totalorder %s199, %s213
      %p215 = scmp.eq.s32.totalorder %s28, 0
      %p216 = por %p214, %p215
      %s218 = sadd.s32 %s217, 1
      %p221 = scmp.eq.s32.totalorder %s22, 3
      %p222 = scmp.ne.s32.totalorder %s217, %s219
      %p223 = scmp.eq.s32.totalorder %s22, 0
      %p224 = por %p222, %p223
      %p225 = scmp.ne.s32.totalorder %s217, %s219
      %p226 = scmp.eq.s32.totalorder %s27, 3
      %p227 = por %p225, %p226
      %p228 = scmp.ne.s32.totalorder %s219, %s220
      %p229 = scmp.eq.s32.totalorder %s27, 0
      %p230 = por %p228, %p229
      %p231 = scmp.ne.s32.totalorder %s219, %s220
      %p232 = scmp.eq.s32.totalorder %s28, 3
      %p233 = por %p231, %p232
      %p235 = scmp.ne.s32.totalorder %s220, %s234
      %p236 = scmp.eq.s32.totalorder %s28, 0
      %p237 = por %p235, %p236
      %s239 = sadd.s32 %s238, 1
      %p242 = scmp.eq.s32.totalorder %s22, 3
      %p243 = scmp.ne.s32.totalorder %s238, %s240
      %p244 = scmp.eq.s32.totalorder %s22, 0
      %p245 = por %p243, %p244
      %p246 = scmp.ne.s32.totalorder %s238, %s240
      %p247 = scmp.eq.s32.totalorder %s27, 3
      %p248 = por %p246, %p247
      %p249 = scmp.ne.s32.totalorder %s240, %s241
      %p250 = scmp.eq.s32.totalorder %s27, 0
      %p251 = por %p249, %p250
      %p252 = scmp.ne.s32.totalorder %s240, %s241
      %p253 = scmp.eq.s32.totalorder %s28, 3
      %p254 = por %p252, %p253
      %p256 = scmp.ne.s32.totalorder %s241, %s255
      %p257 = scmp.eq.s32.totalorder %s28, 0
      %p258 = por %p256, %p257
      %s260 = sadd.s32 %s259, 1
      %p263 = scmp.eq.s32.totalorder %s22, 3
      %p264 = scmp.ne.s32.totalorder %s259, %s261
      %p265 = scmp.eq.s32.totalorder %s22, 0
      %p266 = por %p264, %p265
      %p267 = scmp.ne.s32.totalorder %s259, %s261
      %p268 = scmp.eq.s32.totalorder %s27, 3
      %p269 = por %p267, %p268
      %p270 = scmp.ne.s32.totalorder %s261, %s262
      %p271 = scmp.eq.s32.totalorder %s27, 0
      %p272 = por %p270, %p271
      %p273 = scmp.ne.s32.totalorder %s261, %s262
      %p274 = scmp.eq.s32.totalorder %s28, 3
      %p275 = por %p273, %p274
      %p277 = scmp.ne.s32.totalorder %s262, %s276
      %p278 = scmp.eq.s32.totalorder %s28, 0
      %p279 = por %p277, %p278
      %s281 = sadd.s32 %s280, 1
      %p284 = scmp.eq.s32.totalorder %s22, 3
      %p285 = scmp.ne.s32.totalorder %s280, %s282
      %p286 = scmp.eq.s32.totalorder %s22, 0
      %p287 = por %p285, %p286
      %p288 = scmp.ne.s32.totalorder %s280, %s282
      %p289 = scmp.eq.s32.totalorder %s27, 3
      %p290 = por %p288, %p289
      %p291 = scmp.ne.s32.totalorder %s282, %s283
      %p292 = scmp.eq.s32.totalorder %s27, 0
      %p293 = por %p291, %p292
      %p294 = scmp.ne.s32.totalorder %s282, %s283
      %p295 = scmp.eq.s32.totalorder %s28, 3
      %p296 = por %p294, %p295
      %p298 = scmp.ne.s32.totalorder %s283, %s297
      %p299 = scmp.eq.s32.totalorder %s28, 0
      %p300 = por %p298, %p299
      %s302 = sadd.s32 %s301, 1
      %p305 = scmp.eq.s32.totalorder %s22, 3
      %p306 = scmp.ne.s32.totalorder %s301, %s303
      %p307 = scmp.eq.s32.totalorder %s22, 0
      %p308 = por %p306, %p307
      %p309 = scmp.ne.s32.totalorder %s301, %s303
      %p310 = scmp.eq.s32.totalorder %s27, 3
      %p311 = por %p309, %p310
      %p312 = scmp.ne.s32.totalorder %s303, %s304
      %p313 = scmp.eq.s32.totalorder %s27, 0
      %p314 = por %p312, %p313
      %p315 = scmp.ne.s32.totalorder %s303, %s304
      %p316 = scmp.eq.s32.totalorder %s28, 3
      %p317 = por %p315, %p316
      %p319 = scmp.ne.s32.totalorder %s304, %s318
      %p320 = scmp.eq.s32.totalorder %s28, 0
      %p321 = por %p319, %p320
      %s322 = ssub.s32 %s29, %s41
      %s323 = ssub.s32 %s30, %s37
      %s324 = sor.u32 %s322, %s323
      %p325 = scmp.eq.s32.totalorder %s324, 0
      %s327 = sadd.s32 %s326, 1
      %s328 = scalar_select %p325, %s326, %s327
      %p331 = pneg %p325
      %p332 = scmp.eq.s32.totalorder %s22, 3
      %p333 = por %p331, %p332
      %p334 = scmp.ne.s32.totalorder %s326, %s329
      %p335 = scmp.eq.s32.totalorder %s22, 0
      %p336 = por %p334, %p335
      %p337 = scmp.ne.s32.totalorder %s326, %s329
      %p338 = scmp.eq.s32.totalorder %s27, 3
      %p339 = por %p337, %p338
      %p340 = scmp.ne.s32.totalorder %s329, %s330
      %p341 = scmp.eq.s32.totalorder %s27, 0
      %p342 = por %p340, %p341
      %p343 = scmp.ne.s32.totalorder %s329, %s330
      %p344 = scmp.eq.s32.totalorder %s28, 3
      %p345 = por %p343, %p344
      %p347 = scmp.ne.s32.totalorder %s330, %s346
      %p348 = scmp.eq.s32.totalorder %s28, 0
      %p349 = por %p347, %p348
      %p350 = scmp.le.s32.totalorder 1, %s22
      %p351 = scmp.lt.s32.totalorder %s22, 5
      %p352 = pnand %p350, %p351
      %p353 = pneg %p352
      // Predicated region
      $region9: #{tpu_custom_call.1} parent=5 // pred_check
        _
      $region10: #{tpu_custom_call.1} parent=5 // pred_check_branch
        %355 = sbr.rel (%p352) target = $region12
      $region11: #{tpu_custom_call.1} parent=5 // pred_region
        %s356 = ssub.s32 %s22, 1
        // Predicated region
        $region13: #{tpu_custom_call.1} parent=11 // pred_check
          %p357 = pneg %p83
        $region14: #{tpu_custom_call.1} parent=11 // pred_check_branch
          %359 = sbr.rel (%p357) target = $region16
        $region15: #{tpu_custom_call.1} parent=11 // pred_region
          _
        $region16: #{tpu_custom_call.1} parent=11 // pred_fallthru
          _
        // Predicated region
        $region17: #{tpu_custom_call.1} parent=11 // pred_check
          %p360 = pneg %p104
        $region18: #{tpu_custom_call.1} parent=11 // pred_check_branch
          %362 = sbr.rel (%p360) target = $region20
        $region19: #{tpu_custom_call.1} parent=11 // pred_region
          _
        $region20: #{tpu_custom_call.1} parent=11 // pred_fallthru
          _
        // Predicated region
        $region21: #{tpu_custom_call.1} parent=11 // pred_check
          %p363 = pneg %p125
        $region22: #{tpu_custom_call.1} parent=11 // pred_check_branch
          %365 = sbr.rel (%p363) target = $region24
        $region23: #{tpu_custom_call.1} parent=11 // pred_region
          _
        $region24: #{tpu_custom_call.1} parent=11 // pred_fallthru
          _
        // Predicated region
        $region25: #{tpu_custom_call.1} parent=11 // pred_check
          %p366 = pneg %p146
        $region26: #{tpu_custom_call.1} parent=11 // pred_check_branch
          %368 = sbr.rel (%p366) target = $region28
        $region27: #{tpu_custom_call.1} parent=11 // pred_region
          _
        $region28: #{tpu_custom_call.1} parent=11 // pred_fallthru
          _
        // Predicated region
        $region29: #{tpu_custom_call.1} parent=11 // pred_check
          %p369 = pneg %p167
        $region30: #{tpu_custom_call.1} parent=11 // pred_check_branch
          %371 = sbr.rel (%p369) target = $region32
        $region31: #{tpu_custom_call.1} parent=11 // pred_region
          _
        $region32: #{tpu_custom_call.1} parent=11 // pred_fallthru
          _
        // Predicated region
        $region33: #{tpu_custom_call.1} parent=11 // pred_check
          %p372 = pneg %p188
        $region34: #{tpu_custom_call.1} parent=11 // pred_check_branch
          %374 = sbr.rel (%p372) target = $region36
        $region35: #{tpu_custom_call.1} parent=11 // pred_region
          _
        $region36: #{tpu_custom_call.1} parent=11 // pred_fallthru
          _
        // Predicated region
        $region37: #{tpu_custom_call.1} parent=11 // pred_check
          %p375 = pneg %p209
        $region38: #{tpu_custom_call.1} parent=11 // pred_check_branch
          %377 = sbr.rel (%p375) target = $region40
        $region39: #{tpu_custom_call.1} parent=11 // pred_region
          _
        $region40: #{tpu_custom_call.1} parent=11 // pred_fallthru
          _
        // Predicated region
        $region41: #{tpu_custom_call.1} parent=11 // pred_check
          %p378 = pneg %p230
        $region42: #{tpu_custom_call.1} parent=11 // pred_check_branch
          %380 = sbr.rel (%p378) target = $region44
        $region43: #{tpu_custom_call.1} parent=11 // pred_region
          _
        $region44: #{tpu_custom_call.1} parent=11 // pred_fallthru
          _
        // Predicated region
        $region45: #{tpu_custom_call.1} parent=11 // pred_check
          %p381 = pneg %p251
        $region46: #{tpu_custom_call.1} parent=11 // pred_check_branch
          %383 = sbr.rel (%p381) target = $region48
        $region47: #{tpu_custom_call.1} parent=11 // pred_region
          _
        $region48: #{tpu_custom_call.1} parent=11 // pred_fallthru
          _
        // Predicated region
        $region49: #{tpu_custom_call.1} parent=11 // pred_check
          %p384 = pneg %p272
        $region50: #{tpu_custom_call.1} parent=11 // pred_check_branch
          %386 = sbr.rel (%p384) target = $region52
        $region51: #{tpu_custom_call.1} parent=11 // pred_region
          _
        $region52: #{tpu_custom_call.1} parent=11 // pred_fallthru
          _
        // Predicated region
        $region53: #{tpu_custom_call.1} parent=11 // pred_check
          %p387 = pneg %p293
        $region54: #{tpu_custom_call.1} parent=11 // pred_check_branch
          %389 = sbr.rel (%p387) target = $region56
        $region55: #{tpu_custom_call.1} parent=11 // pred_region
          _
        $region56: #{tpu_custom_call.1} parent=11 // pred_fallthru
          _
        // Predicated region
        $region57: #{tpu_custom_call.1} parent=11 // pred_check
          %p390 = pneg %p314
        $region58: #{tpu_custom_call.1} parent=11 // pred_check_branch
          %392 = sbr.rel (%p390) target = $region60
        $region59: #{tpu_custom_call.1} parent=11 // pred_region
          _
        $region60: #{tpu_custom_call.1} parent=11 // pred_fallthru
          _
      $region12: #{tpu_custom_call.1} parent=5 // pred_fallthru
        _
      %p393 = scmp.lt.s32.totalorder %s22, 4
      // Predicated region
      $region61: #{tpu_custom_call.1} parent=5 // pred_check
        %p394 = pneg %p393
      $region62: #{tpu_custom_call.1} parent=5 // pred_check_branch
        %396 = sbr.rel (%p394) target = $region64
      $region63: #{tpu_custom_call.1} parent=5 // pred_region
        // Predicated region
        $region65: #{tpu_custom_call.1} parent=63 // pred_check
          %p397 = pneg %p56
        $region66: #{tpu_custom_call.1} parent=63 // pred_check_branch
          %399 = sbr.rel (%p397) target = $region68
        $region67: #{tpu_custom_call.1} parent=63 // pred_region
          %p400 = scmp.lt.s32.totalorder %s29, 1
          %s401 = scalar_select %p400, %s29, 1
          %p402 = scmp.lt.s32.totalorder %s30, 1
          %s403 = scalar_select %p402, %s30, 1
          %s404 = smul.addr %s401, 2
          %s405 = sadd.s32 %s403, %s404
          %s406 = smul.addr %s405, 8
          %s407 = scalar_lea.vmem %s0, %s406
        $region68: #{tpu_custom_call.1} parent=63 // pred_fallthru
          _
      $region64: #{tpu_custom_call.1} parent=5 // pred_fallthru
        _
      %p408 = scmp.le.s32.totalorder 1, %s22
      %p409 = scmp.lt.s32.totalorder %s22, 5
      %p410 = pnand %p408, %p409
      %p411 = pneg %p410
      // Predicated region
      $region69: #{tpu_custom_call.1} parent=5 // pred_check
        _
      $region70: #{tpu_custom_call.1} parent=5 // pred_check_branch
        %413 = sbr.rel (%p410) target = $region72
      $region71: #{tpu_custom_call.1} parent=5 // pred_region
        %s414 = ssub.s32 %s22, 1
        %p415 = scmp.lt.s32.totalorder %s31, 1
        %s416 = scalar_select %p415, %s31, 1
        %p417 = scmp.lt.s32.totalorder %s32, 1
        %s418 = scalar_select %p417, %s32, 1
        %s419 = smul.addr %s416, 2
        %s420 = sadd.s32 %s418, %s419
        %s421 = smul.addr %s420, 8
        %s422 = scalar_lea.vmem %s0, %s421
        %p423 = pneg %p62
        %p424 = pneg %p59
        %p425 = pneg %p83
        %p426 = pneg %p80
        %p427 = pneg %p104
        %p428 = pneg %p101
        %p429 = pneg %p125
        %p430 = pneg %p122
        %p431 = pneg %p146
        %p432 = pneg %p143
        %p433 = pneg %p167
        %p434 = pneg %p164
        %p435 = pneg %p188
        %p436 = pneg %p185
        %p437 = pneg %p209
        %p438 = pneg %p206
        %p439 = pneg %p230
        %p440 = pneg %p227
        %p441 = pneg %p251
        %p442 = pneg %p248
        %p443 = pneg %p272
        %p444 = pneg %p269
        %p445 = pneg %p293
        %p446 = pneg %p290
        %p447 = pneg %p314
        %p448 = pneg %p311
        %p449 = pneg %p342
        %p450 = pneg %p339
        %s451 = sand.u32 %s329, 1
        %s452 = scalar_lea.sflag [#allocation7], %s451
        %s453 = sand.u32 %s329, 1
        %s454 = smul.addr %s453, 8
        %s455 = scalar_lea.vmem [#allocation6], %s454
        %p456 = scmp.lt.s32.totalorder %s31, 1
        %s457 = scalar_select %p456, %s31, 1
        %p458 = scmp.lt.s32.totalorder %s32, 1
        %s459 = scalar_select %p458, %s32, 1
        %s460 = smul.addr %s457, 2
        %s461 = sadd.s32 %s459, %s460
        %s462 = smul.addr %s461, 8
        %s463 = scalar_lea.vmem %s0, %s462
        %p465 = scmp.eq.s32.totalorder %s32, 0
        // Predicated region
        $region73: #{tpu_custom_call.1} parent=71 // pred_check
          %p466 = pneg %p465
        $region74: #{tpu_custom_call.1} parent=71 // pred_check_branch
          %468 = sbr.rel (%p466) target = $region76
        $region75: #{tpu_custom_call.1} parent=71 // pred_region
          %vm469 = vcmask 254976
          %470 = vst.msk [vmem:[#allocation2] sm:$0x3] %vm469, 0.0
          %471 = vst.msk [vmem:[#allocation3] sm:$0x3] %vm469, 0.0
          %vm472 = vcmask 257024
          %473 = vst.msk [vmem:[#allocation4] sm:$0xf] %vm472, 0.0
          %vm474 = vcmask 191488
          %475 = vst.msk [vmem:[#allocation5] sm:$0xf] %vm474, 0.0
        $region76: #{tpu_custom_call.1} parent=71 // pred_fallthru
          _
        %v476 = vld [vmem:[%s463] sm:$0xff]
        %v477 = vld [vmem:[#allocation2] sm:$0x3]
        %v479 = vrot.slane %v476, 6
        %vm481 = vcmask 1041408
        %v482 = vsel %vm481, %v477, %v479
        %vm483 = vcmask 254976
        %484 = vst.msk [vmem:[#allocation2] sm:$0x3] %vm483, %v479
        %v485 = vpack.c.bf16 %v482, %v482
        %v486 = vpack.c.bf16 %v479, %v482
        %v488 = vshrl.u32 %v486, 16
        %v490 = vshll.u32 %v486, 16
        %v492 = vrot.slane %v490, 1
        %v493 = vor.u32 %v488, %v492
        %494 = vrot.lane.b32.xlu0 %v493, 32
        %v495 = vpop.permute.xlu0 %494
        %v497 = vrot.slane %v486, 1
        %498 = vrot.lane.b32.xlu0 %v497, 64
        %v499 = vpop.permute.xlu0 %498
        %vm500 = vcmask 261120
        %v503 = vsel %vm500, %v485, %v495
        %vm504 = vcmask 523264
        %v506 = vsel %vm504, %v503, %v499
        %v507 = vld [vmem:[%s1] sm:$0xf]
        %v508 = vld [vmem:[%s1 + $0x4] sm:$0xf]
        %v509 = vld [vmem:[%s1 + $0x8] sm:$0xf]
        %v510 = vld [vmem:[%s1 + $0xc] sm:$0xf]
        %v511 = vld [vmem:[%s1 + $0x10] sm:$0xf]
        %v512 = vld [vmem:[%s1 + $0x14] sm:$0xf]
        %v513 = vld [vmem:[%s1 + $0x18] sm:$0xf]
        %v514 = vld [vmem:[%s1 + $0x1c] sm:$0xf]
        %v515 = vld [vmem:[%s1 + $0x20] sm:$0xf]
        %v516 = vld [vmem:[%s1 + $0x24] sm:$0xf]
        %v517 = vld [vmem:[%s1 + $0x28] sm:$0xf]
        %v518 = vld [vmem:[%s1 + $0x2c] sm:$0xf]
        %v519 = vld [vmem:[%s2] sm:$0x1]
        %v521 = vlaneseq
        %v522 = vshrl.u32 %v521, 7
        %v523 = vsub.s32 0, %v522
        %v524 = vrot.slane %v519, %v523
        %v538 = vunpack.c.l.b16 %v507
        %v539 = vunpack.c.l.b16 %v508
        %v540 = vunpack.c.l.b16 %v509
        %v541 = vunpack.c.l.b16 %v510
        %v542 = vunpack.c.l.b16 %v511
        %v543 = vunpack.c.l.b16 %v512
        %v544 = vunpack.c.l.b16 %v513
        %v545 = vunpack.c.l.b16 %v514
        %v546 = vunpack.c.l.b16 %v515
        %v547 = vunpack.c.l.b16 %v516
        %v548 = vunpack.c.l.b16 %v517
        %v549 = vunpack.c.l.b16 %v518
        %v550 = vpack.c.b16 %v539, %v538
        %v551 = vpack.c.b16 %v541, %v540
        %v552 = vpack.c.b16 %v543, %v542
        %v553 = vpack.c.b16 %v545, %v544
        %v554 = vpack.c.b16 %v547, %v546
        %v555 = vpack.c.b16 %v549, %v548
        %vm562 = vcmask 785408
        %v563 = vsel %vm562, %v506, 0
        %565 = vmatprep.subr.bf16.mxu0 0
        %566 = vmatpush1.bf16.msra.mxu0 %v550
        %567 = vmatprep.subr.bf16.mxu0 0
        %568 = vmatpush1.bf16.msra.mxu0 %v551
        %569 = vmatprep.subr.bf16.mxu0 0
        %570 = vmatpush1.bf16.msra.mxu0 %v552
        %571 = vmatprep.subr.bf16.mxu0 0
        %572 = vmatpush1.bf16.msra.mxu0 %v553
        %573 = vmatprep.subr.bf16.mxu0 0
        %574 = vmatpush1.bf16.msra.mxu0 %v554
        %575 = vmatprep.subr.bf16.mxu0 0
        %576 = vmatpush1.bf16.msra.mxu0 %v555
        %577 = vmatprep.subr.bf16.mxu0 0
        %578 = vmatpush1.bf16.msra.mxu0 0
        %579 = vmatprep.subr.bf16.mxu0 0
        %580 = vmatpush1.bf16.msra.mxu0 0
        %581 = vmatprep.subr.bf16.mxu0 0
        %582 = vmatpush1.bf16.msra.mxu0 0
        %583 = vmatprep.subr.bf16.mxu0 0
        %584 = vmatpush1.bf16.msra.mxu0 0
        %585 = vmatprep.subr.bf16.mxu0 0
        %586 = vmatpush1.bf16.msra.mxu0 0
        %587 = vmatprep.subr.bf16.mxu0 0
        %588 = vmatpush1.bf16.msra.mxu0 0
        %589 = vmatprep.subr.bf16.mxu0 0
        %590 = vmatpush1.bf16.msra.mxu0 0
        %591 = vmatprep.subr.bf16.mxu0 0
        %592 = vmatpush1.bf16.msra.mxu0 0
        %593 = vmatprep.subr.bf16.mxu0 0
        %594 = vmatpush1.bf16.msra.mxu0 0
        %595 = vmatprep.subr.bf16.mxu0 0
        %596 = vmatpush1.bf16.msra.mxu0 0
        %597 = vmatprep.mubr.bf16.mxu0 0
        %598 = vmatmul.mubr.bf16.gmra.mrb[0].mxu0 %v563
        %v599 = vpop.f32.mrb[0].mxu0
        %v600 = vadd.f32 %v524, %v599
        %v601 = vpop.f32.mrb[0].mxu0
        %v602 = vpop.f32.mrb[0].mxu0
        %v603 = vpop.f32.mrb[0].mxu0
        %604 = vdwg.mxu0
        %v605 = vmax.f32 %v600, 0.0
        %v606 = vld [vmem:[#allocation3] sm:$0x3]
        %v608 = vrot.slane %v605, 6
        %v610 = vsel %vm481, %v606, %v608
        %611 = vst.msk [vmem:[#allocation3] sm:$0x3] %vm483, %v608
        %v612 = vpack.c.bf16 %v610, %v610
        %v613 = vpack.c.bf16 %v608, %v610
        %v615 = vshrl.u32 %v613, 16
        %v617 = vshll.u32 %v613, 16
        %v619 = vrot.slane %v617, 1
        %v620 = vor.u32 %v615, %v619
        %621 = vrot.lane.b32.xlu0 %v620, 32
        %v622 = vpop.permute.xlu0 %621
        %v624 = vrot.slane %v613, 1
        %625 = vrot.lane.b32.xlu0 %v624, 64
        %v626 = vpop.permute.xlu0 %625
        %v629 = vsel %vm500, %v612, %v622
        %v631 = vsel %vm504, %v629, %v626
        %v632 = vld [vmem:[%s3] sm:$0xf]
        %v633 = vld [vmem:[%s3 + $0x4] sm:$0xf]
        %v634 = vld [vmem:[%s3 + $0x8] sm:$0xf]
        %v635 = vld [vmem:[%s3 + $0xc] sm:$0xf]
        %v636 = vld [vmem:[%s3 + $0x10] sm:$0xf]
        %v637 = vld [vmem:[%s3 + $0x14] sm:$0xf]
        %v638 = vld [vmem:[%s3 + $0x18] sm:$0xf]
        %v639 = vld [vmem:[%s3 + $0x1c] sm:$0xf]
        %v640 = vld [vmem:[%s3 + $0x20] sm:$0xf]
        %v641 = vld [vmem:[%s3 + $0x24] sm:$0xf]
        %v642 = vld [vmem:[%s3 + $0x28] sm:$0xf]
        %v643 = vld [vmem:[%s3 + $0x2c] sm:$0xf]
        %v644 = vld [vmem:[%s4] sm:$0x1]
        %v646 = vlaneseq
        %v647 = vshrl.u32 %v646, 7
        %v648 = vsub.s32 0, %v647
        %v649 = vrot.slane %v644, %v648
        %v663 = vunpack.c.l.b16 %v632
        %v664 = vunpack.c.l.b16 %v633
        %v665 = vunpack.c.l.b16 %v634
        %v666 = vunpack.c.l.b16 %v635
        %v667 = vunpack.c.l.b16 %v636
        %v668 = vunpack.c.l.b16 %v637
        %v669 = vunpack.c.l.b16 %v638
        %v670 = vunpack.c.l.b16 %v639
        %v671 = vunpack.c.l.b16 %v640
        %v672 = vunpack.c.l.b16 %v641
        %v673 = vunpack.c.l.b16 %v642
        %v674 = vunpack.c.l.b16 %v643
        %v675 = vpack.c.b16 %v664, %v663
        %v676 = vpack.c.b16 %v666, %v665
        %v677 = vpack.c.b16 %v668, %v667
        %v678 = vpack.c.b16 %v670, %v669
        %v679 = vpack.c.b16 %v672, %v671
        %v680 = vpack.c.b16 %v674, %v673
        %v687 = vsel %vm562, %v631, 0
        %689 = vmatprep.subr.bf16.mxu0 0
        %690 = vmatpush1.bf16.msra.mxu0 %v675
        %691 = vmatprep.subr.bf16.mxu0 0
        %692 = vmatpush1.bf16.msra.mxu0 %v676
        %693 = vmatprep.subr.bf16.mxu0 0
        %694 = vmatpush1.bf16.msra.mxu0 %v677
        %695 = vmatprep.subr.bf16.mxu0 0
        %696 = vmatpush1.bf16.msra.mxu0 %v678
        %697 = vmatprep.subr.bf16.mxu0 0
        %698 = vmatpush1.bf16.msra.mxu0 %v679
        %699 = vmatprep.subr.bf16.mxu0 0
        %700 = vmatpush1.bf16.msra.mxu0 %v680
        %701 = vmatprep.subr.bf16.mxu0 0
        %702 = vmatpush1.bf16.msra.mxu0 0
        %703 = vmatprep.subr.bf16.mxu0 0
        %704 = vmatpush1.bf16.msra.mxu0 0
        %705 = vmatprep.subr.bf16.mxu0 0
        %706 = vmatpush1.bf16.msra.mxu0 0
        %707 = vmatprep.subr.bf16.mxu0 0
        %708 = vmatpush1.bf16.msra.mxu0 0
        %709 = vmatprep.subr.bf16.mxu0 0
        %710 = vmatpush1.bf16.msra.mxu0 0
        %711 = vmatprep.subr.bf16.mxu0 0
        %712 = vmatpush1.bf16.msra.mxu0 0
        %713 = vmatprep.subr.bf16.mxu0 0
        %714 = vmatpush1.bf16.msra.mxu0 0
        %715 = vmatprep.subr.bf16.mxu0 0
        %716 = vmatpush1.bf16.msra.mxu0 0
        %717 = vmatprep.subr.bf16.mxu0 0
        %718 = vmatpush1.bf16.msra.mxu0 0
        %719 = vmatprep.subr.bf16.mxu0 0
        %720 = vmatpush1.bf16.msra.mxu0 0
        %721 = vmatprep.mubr.bf16.mxu0 0
        %722 = vmatmul.mubr.bf16.gmra.mrb[0].mxu0 %v687
        %v723 = vpop.f32.mrb[0].mxu0
        %v724 = vadd.f32 %v649, %v723
        %v725 = vpop.f32.mrb[0].mxu0
        %v726 = vpop.f32.mrb[0].mxu0
        %v727 = vpop.f32.mrb[0].mxu0
        %728 = vdwg.mxu0
        %v729 = vmax.f32 %v724, 0.0
        %v730 = vadd.f32 %v729, %v476
        %v731 = vmax.f32 %v730, 0.0
        %v732 = vld [vmem:[#allocation4] sm:$0xf]
        %v734 = vrot.slane %v731, 4
        %vm736 = vcmask 1043456
        %v737 = vsel %vm736, %v732, %v734
        %vm738 = vcmask 257024
        %739 = vst.msk [vmem:[#allocation4] sm:$0xf] %vm738, %v734
        %v740 = vpack.c.bf16 %v737, %v737
        %v741 = vpack.c.bf16 %v734, %v737
        %v743 = vrot.slane %v741, 1
        %744 = vrot.lane.b32.xlu0 %v743, 32
        %v745 = vpop.permute.xlu0 %744
        %v746 = vrot.slane %v741, 2
        %747 = vrot.lane.b32.xlu0 %v746, 64
        %v748 = vpop.permute.xlu0 %747
        %v751 = vsel %vm500, %v740, %v745
        %v753 = vsel %vm504, %v751, %v748
        %v754 = vld [vmem:[%s5] sm:$0xf]
        %v755 = vld [vmem:[%s5 + $0x4] sm:$0xf]
        %v756 = vld [vmem:[%s5 + $0x8] sm:$0xf]
        %v757 = vld [vmem:[%s5 + $0xc] sm:$0xf]
        %v758 = vld [vmem:[%s5 + $0x10] sm:$0xf]
        %v759 = vld [vmem:[%s5 + $0x14] sm:$0xf]
        %v760 = vld [vmem:[%s5 + $0x18] sm:$0xf]
        %v761 = vld [vmem:[%s5 + $0x1c] sm:$0xf]
        %v762 = vld [vmem:[%s5 + $0x20] sm:$0xf]
        %v763 = vld [vmem:[%s5 + $0x24] sm:$0xf]
        %v764 = vld [vmem:[%s5 + $0x28] sm:$0xf]
        %v765 = vld [vmem:[%s5 + $0x2c] sm:$0xf]
        %v766 = vld [vmem:[%s6] sm:$0x1]
        %v768 = vlaneseq
        %v769 = vshrl.u32 %v768, 7
        %v770 = vsub.s32 0, %v769
        %v771 = vrot.slane %v766, %v770
        %v785 = vunpack.c.l.b16 %v754
        %v786 = vunpack.c.l.b16 %v755
        %v787 = vunpack.c.l.b16 %v756
        %v788 = vunpack.c.l.b16 %v757
        %v789 = vunpack.c.l.b16 %v758
        %v790 = vunpack.c.l.b16 %v759
        %v791 = vunpack.c.l.b16 %v760
        %v792 = vunpack.c.l.b16 %v761
        %v793 = vunpack.c.l.b16 %v762
        %v794 = vunpack.c.l.b16 %v763
        %v795 = vunpack.c.l.b16 %v764
        %v796 = vunpack.c.l.b16 %v765
        %v797 = vpack.c.b16 %v786, %v785
        %v798 = vpack.c.b16 %v788, %v787
        %v799 = vpack.c.b16 %v790, %v789
        %v800 = vpack.c.b16 %v792, %v791
        %v801 = vpack.c.b16 %v794, %v793
        %v802 = vpack.c.b16 %v796, %v795
        %v809 = vsel %vm562, %v753, 0
        %811 = vmatprep.subr.bf16.mxu0 0
        %812 = vmatpush1.bf16.msra.mxu0 %v797
        %813 = vmatprep.subr.bf16.mxu0 0
        %814 = vmatpush1.bf16.msra.mxu0 %v798
        %815 = vmatprep.subr.bf16.mxu0 0
        %816 = vmatpush1.bf16.msra.mxu0 %v799
        %817 = vmatprep.subr.bf16.mxu0 0
        %818 = vmatpush1.bf16.msra.mxu0 %v800
        %819 = vmatprep.subr.bf16.mxu0 0
        %820 = vmatpush1.bf16.msra.mxu0 %v801
        %821 = vmatprep.subr.bf16.mxu0 0
        %822 = vmatpush1.bf16.msra.mxu0 %v802
        %823 = vmatprep.subr.bf16.mxu0 0
        %824 = vmatpush1.bf16.msra.mxu0 0
        %825 = vmatprep.subr.bf16.mxu0 0
        %826 = vmatpush1.bf16.msra.mxu0 0
        %827 = vmatprep.subr.bf16.mxu0 0
        %828 = vmatpush1.bf16.msra.mxu0 0
        %829 = vmatprep.subr.bf16.mxu0 0
        %830 = vmatpush1.bf16.msra.mxu0 0
        %831 = vmatprep.subr.bf16.mxu0 0
        %832 = vmatpush1.bf16.msra.mxu0 0
        %833 = vmatprep.subr.bf16.mxu0 0
        %834 = vmatpush1.bf16.msra.mxu0 0
        %835 = vmatprep.subr.bf16.mxu0 0
        %836 = vmatpush1.bf16.msra.mxu0 0
        %837 = vmatprep.subr.bf16.mxu0 0
        %838 = vmatpush1.bf16.msra.mxu0 0
        %839 = vmatprep.subr.bf16.mxu0 0
        %840 = vmatpush1.bf16.msra.mxu0 0
        %841 = vmatprep.subr.bf16.mxu0 0
        %842 = vmatpush1.bf16.msra.mxu0 0
        %843 = vmatprep.mubr.bf16.mxu0 0
        %844 = vmatmul.mubr.bf16.gmra.mrb[0].mxu0 %v809
        %v845 = vpop.f32.mrb[0].mxu0
        %v846 = vadd.f32 %v771, %v845
        %v847 = vpop.f32.mrb[0].mxu0
        %v848 = vpop.f32.mrb[0].mxu0
        %v849 = vpop.f32.mrb[0].mxu0
        %850 = vdwg.mxu0
        %v851 = vmax.f32 %v846, 0.0
        %v852 = vld [vmem:[#allocation5] sm:$0xf]
        %v854 = vrot.slane %v851, 4
        %v856 = vsel %vm736, %v852, %v854
        %vm857 = vcmask 191488
        %858 = vst.msk [vmem:[#allocation5] sm:$0xf] %vm857, %v854
        %v859 = vpack.c.bf16 %v856, %v856
        %v860 = vpack.c.bf16 %v854, %v856
        %v862 = vrot.slane %v860, 1
        %863 = vrot.lane.b32.xlu0 %v862, 24
        %v864 = vpop.permute.xlu0 %863
        %v865 = vrot.slane %v860, 2
        %866 = vrot.lane.b32.xlu0 %v865, 48
        %v867 = vpop.permute.xlu0 %866
        %vm868 = vcmask 195584
        %v871 = vsel %vm868, %v859, %v864
        %vm872 = vcmask 392192
        %v874 = vsel %vm872, %v871, %v867
        %v875 = vld [vmem:[%s7] sm:$0xf]
        %v876 = vld [vmem:[%s7 + $0x4] sm:$0xf]
        %v877 = vld [vmem:[%s7 + $0x8] sm:$0xf]
        %v878 = vld [vmem:[%s7 + $0xc] sm:$0xf]
        %v879 = vld [vmem:[%s7 + $0x10] sm:$0xf]
        %v880 = vld [vmem:[%s7 + $0x14] sm:$0xf]
        %v881 = vld [vmem:[%s7 + $0x18] sm:$0xf]
        %v882 = vld [vmem:[%s7 + $0x1c] sm:$0xf]
        %v883 = vld [vmem:[%s7 + $0x20] sm:$0xf]
        %v884 = vld [vmem:[%s8] sm:$0x1]
        %v886 = vlaneseq
        %v887 = vshrl.u32 %v886, 7
        %v888 = vsub.s32 0, %v887
        %v889 = vrot.slane %v884, %v888
        %v900 = vunpack.c.l.b16 %v875
        %v901 = vunpack.c.l.b16 %v876
        %v902 = vunpack.c.l.b16 %v877
        %v903 = vunpack.c.l.b16 %v878
        %v904 = vunpack.c.l.b16 %v879
        %v905 = vunpack.c.l.b16 %v880
        %v906 = vunpack.c.l.b16 %v881
        %v907 = vunpack.c.l.b16 %v882
        %v908 = vunpack.c.l.b16 %v883
        %v909 = vpack.c.b16 %v901, %v900
        %v910 = vpack.c.b16 %v903, %v902
        %v911 = vpack.c.b16 %v905, %v904
        %v912 = vpack.c.b16 %v907, %v906
        %v913 = vpack.c.b16 %v908, %v908
        %vm918 = vcmask 588800
        %v919 = vsel %vm918, %v874, 0
        %v922 = vsel %vm736, %v913, 0
        %924 = vmatprep.subr.bf16.mxu0 0
        %925 = vmatpush1.bf16.msra.mxu0 %v909
        %926 = vmatprep.subr.bf16.mxu0 0
        %927 = vmatpush1.bf16.msra.mxu0 %v910
        %928 = vmatprep.subr.bf16.mxu0 0
        %929 = vmatpush1.bf16.msra.mxu0 %v911
        %930 = vmatprep.subr.bf16.mxu0 0
        %931 = vmatpush1.bf16.msra.mxu0 %v912
        %932 = vmatprep.subr.bf16.mxu0 0
        %933 = vmatpush1.bf16.msra.mxu0 %v922
        %934 = vmatprep.subr.bf16.mxu0 0
        %935 = vmatpush1.bf16.msra.mxu0 0
        %936 = vmatprep.subr.bf16.mxu0 0
        %937 = vmatpush1.bf16.msra.mxu0 0
        %938 = vmatprep.subr.bf16.mxu0 0
        %939 = vmatpush1.bf16.msra.mxu0 0
        %940 = vmatprep.subr.bf16.mxu0 0
        %941 = vmatpush1.bf16.msra.mxu0 0
        %942 = vmatprep.subr.bf16.mxu0 0
        %943 = vmatpush1.bf16.msra.mxu0 0
        %944 = vmatprep.subr.bf16.mxu0 0
        %945 = vmatpush1.bf16.msra.mxu0 0
        %946 = vmatprep.subr.bf16.mxu0 0
        %947 = vmatpush1.bf16.msra.mxu0 0
        %948 = vmatprep.subr.bf16.mxu0 0
        %949 = vmatpush1.bf16.msra.mxu0 0
        %950 = vmatprep.subr.bf16.mxu0 0
        %951 = vmatpush1.bf16.msra.mxu0 0
        %952 = vmatprep.subr.bf16.mxu0 0
        %953 = vmatpush1.bf16.msra.mxu0 0
        %954 = vmatprep.subr.bf16.mxu0 0
        %955 = vmatpush1.bf16.msra.mxu0 0
        %956 = vmatprep.mubr.bf16.mxu0 0
        %957 = vmatmul.mubr.bf16.gmra.mrb[0].mxu0 %v919
        %v958 = vpop.f32.mrb[0].mxu0
        %v959 = vadd.f32 %v889, %v958
        %v960 = vpop.f32.mrb[0].mxu0
        %v961 = vpop.f32.mrb[0].mxu0
        %v962 = vpop.f32.mrb[0].mxu0
        %963 = vdwg.mxu0
        %v964 = vmax.f32 %v959, 0.0
        %v965 = vpack.c.bf16 %v731, %v731
        %v966 = vld [vmem:[%s9] sm:$0xf]
        %v967 = vld [vmem:[%s9 + $0x4] sm:$0xf]
        %v968 = vld [vmem:[%s9 + $0x8] sm:$0xf]
        %v969 = vld [vmem:[%s9 + $0xc] sm:$0xf]
        %v970 = vld [vmem:[%s10] sm:$0x1]
        %v972 = vlaneseq
        %v973 = vshrl.u32 %v972, 7
        %v974 = vsub.s32 0, %v973
        %v975 = vrot.slane %v970, %v974
        %v981 = vunpack.c.l.b16 %v966
        %v982 = vunpack.c.l.b16 %v967
        %v983 = vunpack.c.l.b16 %v968
        %v984 = vunpack.c.l.b16 %v969
        %v985 = vpack.c.b16 %v982, %v981
        %v986 = vpack.c.b16 %v984, %v983
        %v990 = vsel %vm500, %v965, 0
        %992 = vmatprep.subr.bf16.mxu0 0
        %993 = vmatpush1.bf16.msra.mxu0 %v985
        %994 = vmatprep.subr.bf16.mxu0 0
        %995 = vmatpush1.bf16.msra.mxu0 %v986
        %996 = vmatprep.subr.bf16.mxu0 0
        %997 = vmatpush1.bf16.msra.mxu0 0
        %998 = vmatprep.subr.bf16.mxu0 0
        %999 = vmatpush1.bf16.msra.mxu0 0
        %1000 = vmatprep.subr.bf16.mxu0 0
        %1001 = vmatpush1.bf16.msra.mxu0 0
        %1002 = vmatprep.subr.bf16.mxu0 0
        %1003 = vmatpush1.bf16.msra.mxu0 0
        %1004 = vmatprep.subr.bf16.mxu0 0
        %1005 = vmatpush1.bf16.msra.mxu0 0
        %1006 = vmatprep.subr.bf16.mxu0 0
        %1007 = vmatpush1.bf16.msra.mxu0 0
        %1008 = vmatprep.subr.bf16.mxu0 0
        %1009 = vmatpush1.bf16.msra.mxu0 0
        %1010 = vmatprep.subr.bf16.mxu0 0
        %1011 = vmatpush1.bf16.msra.mxu0 0
        %1012 = vmatprep.subr.bf16.mxu0 0
        %1013 = vmatpush1.bf16.msra.mxu0 0
        %1014 = vmatprep.subr.bf16.mxu0 0
        %1015 = vmatpush1.bf16.msra.mxu0 0
        %1016 = vmatprep.subr.bf16.mxu0 0
        %1017 = vmatpush1.bf16.msra.mxu0 0
        %1018 = vmatprep.subr.bf16.mxu0 0
        %1019 = vmatpush1.bf16.msra.mxu0 0
        %1020 = vmatprep.subr.bf16.mxu0 0
        %1021 = vmatpush1.bf16.msra.mxu0 0
        %1022 = vmatprep.subr.bf16.mxu0 0
        %1023 = vmatpush1.bf16.msra.mxu0 0
        %1024 = vmatprep.mubr.bf16.mxu0 0
        %1025 = vmatmul.mubr.bf16.gmra.mrb[0].mxu0 %v990
        %v1026 = vpop.f32.mrb[0].mxu0
        %v1027 = vadd.f32 %v975, %v1026
        %v1028 = vpop.f32.mrb[0].mxu0
        %v1029 = vpop.f32.mrb[0].mxu0
        %v1030 = vpop.f32.mrb[0].mxu0
        %1031 = vdwg.mxu0
        %v1032 = vadd.f32 %v964, %v1027
        %v1033 = vmax.f32 %v1032, 0.0
        %v1034 = vpack.c.bf16 %v1033, %v1033
        %v1035 = vld [vmem:[%s11] sm:$0xf]
        %v1036 = vld [vmem:[%s11 + $0x4] sm:$0xf]
        %v1037 = vld [vmem:[%s11 + $0x8] sm:$0xf]
        %v1038 = vld [vmem:[%s12] sm:$0x1]
        %v1040 = vlaneseq
        %v1041 = vshrl.u32 %v1040, 7
        %v1042 = vsub.s32 0, %v1041
        %v1043 = vrot.slane %v1038, %v1042
        %v1048 = vunpack.c.l.b16 %v1035
        %v1049 = vunpack.c.l.b16 %v1036
        %v1050 = vunpack.c.l.b16 %v1037
        %v1051 = vpack.c.b16 %v1049, %v1048
        %v1052 = vpack.c.b16 %v1050, %v1050
        %v1055 = vsel %vm868, %v1034, 0
        %v1058 = vsel %vm736, %v1052, 0
        %1060 = vmatprep.subr.bf16.mxu0 0
        %1061 = vmatpush1.bf16.msra.mxu0 %v1051
        %1062 = vmatprep.subr.bf16.mxu0 0
        %1063 = vmatpush1.bf16.msra.mxu0 %v1058
        %1064 = vmatprep.subr.bf16.mxu0 0
        %1065 = vmatpush1.bf16.msra.mxu0 0
        %1066 = vmatprep.subr.bf16.mxu0 0
        %1067 = vmatpush1.bf16.msra.mxu0 0
        %1068 = vmatprep.subr.bf16.mxu0 0
        %1069 = vmatpush1.bf16.msra.mxu0 0
        %1070 = vmatprep.subr.bf16.mxu0 0
        %1071 = vmatpush1.bf16.msra.mxu0 0
        %1072 = vmatprep.subr.bf16.mxu0 0
        %1073 = vmatpush1.bf16.msra.mxu0 0
        %1074 = vmatprep.subr.bf16.mxu0 0
        %1075 = vmatpush1.bf16.msra.mxu0 0
        %1076 = vmatprep.subr.bf16.mxu0 0
        %1077 = vmatpush1.bf16.msra.mxu0 0
        %1078 = vmatprep.subr.bf16.mxu0 0
        %1079 = vmatpush1.bf16.msra.mxu0 0
        %1080 = vmatprep.subr.bf16.mxu0 0
        %1081 = vmatpush1.bf16.msra.mxu0 0
        %1082 = vmatprep.subr.bf16.mxu0 0
        %1083 = vmatpush1.bf16.msra.mxu0 0
        %1084 = vmatprep.subr.bf16.mxu0 0
        %1085 = vmatpush1.bf16.msra.mxu0 0
        %1086 = vmatprep.subr.bf16.mxu0 0
        %1087 = vmatpush1.bf16.msra.mxu0 0
        %1088 = vmatprep.subr.bf16.mxu0 0
        %1089 = vmatpush1.bf16.msra.mxu0 0
        %1090 = vmatprep.subr.bf16.mxu0 0
        %1091 = vmatpush1.bf16.msra.mxu0 0
        %1092 = vmatprep.mubr.bf16.mxu0 0
        %1093 = vmatmul.mubr.bf16.gmra.mrb[0].mxu0 %v1055
        %v1094 = vpop.f32.mrb[0].mxu0
        %v1095 = vadd.f32 %v1043, %v1094
        %v1096 = vpop.f32.mrb[0].mxu0
        %v1097 = vpop.f32.mrb[0].mxu0
        %v1098 = vpop.f32.mrb[0].mxu0
        %1099 = vdwg.mxu0
        %1100 = vst [vmem:[%s455] sm:$0xff] %v1095
        %s1101 = sand.u32 %s329, 1
        %s1102 = scalar_lea.sflag [#allocation7], %s1101
        %s1103 = sand.u32 %s329, 1
        %s1104 = smul.addr %s1103, 8
        %s1105 = scalar_lea.vmem [#allocation6], %s1104
        // Predicated region
        $region77: #{tpu_custom_call.1} parent=71 // pred_check
          %p1106 = pneg %p339
        $region78: #{tpu_custom_call.1} parent=71 // pred_check_branch
          %1108 = sbr.rel (%p1106) target = $region80
        $region79: #{tpu_custom_call.1} parent=71 // pred_region
          %s1110 = ssub.s32 128, 128
          %1111 = vsyncadd %s1102, %s1110
          %s1112 = smul.addr %s31, 2
          %s1113 = sadd.s32 %s32, %s1112
          %s1114 = smul.addr %s1113, 128
          %s1115 = scalar_lea.hbm %s13, %s1114
          %s1117 = sshll.u32 %s1105, 4
          %s1118 = int_to_ptr.vmem [resolvable:$true] %s1117
          %1120 = dma.vmem_to_hbm [thread:$0]  %s1118, 128, %s1115, %s1102
        $region80: #{tpu_custom_call.1} parent=71 // pred_fallthru
          _
      $region72: #{tpu_custom_call.1} parent=5 // pred_fallthru
        _
      %p1121 = scmp.le.s32.totalorder 2, %s22
      // Predicated region
      $region81: #{tpu_custom_call.1} parent=5 // pred_check
        %p1122 = pneg %p1121
      $region82: #{tpu_custom_call.1} parent=5 // pred_check_branch
        %1124 = sbr.rel (%p1122) target = $region84
      $region83: #{tpu_custom_call.1} parent=5 // pred_region
        %s1125 = ssub.s32 %s22, 2
        // Predicated region
        $region85: #{tpu_custom_call.1} parent=83 // pred_check
          %p1126 = pneg %p345
        $region86: #{tpu_custom_call.1} parent=83 // pred_check_branch
          %1128 = sbr.rel (%p1126) target = $region88
        $region87: #{tpu_custom_call.1} parent=83 // pred_region
          %s1129 = sand.u32 %s330, 1
          %s1130 = scalar_lea.sflag [#allocation7], %s1129
          %s1131 = sand.u32 %s330, 1
          %s1132 = smul.addr %s1131, 8
          %s1133 = scalar_lea.vmem [#allocation6], %s1132
          %1134 = dma.done %s1130, 128
        $region88: #{tpu_custom_call.1} parent=83 // pred_fallthru
          _
      $region84: #{tpu_custom_call.1} parent=5 // pred_fallthru
        _
    $region6: #{tpu_custom_call.1} parent=1 // loop_footer
      %s26 = sadd.s32 1, %s22
    $region7: #{tpu_custom_call.1} parent=1 // loop_footer_branch
      %21 = sbr.rel target = $region3
    $region8: #{tpu_custom_call.1} parent=1 // loop_exit
      _
    %1135 = vsyncpa [#allocation7], 1
    %s1136 = scalar_lea.sflag [#allocation7], 1
    %1137 = vsyncpa %s1136, 1

</llo_original>
